<compile_context>
chip_gen: v5e
topology: v5e:2x2
jax: 0.10.0
libtpu: 0.0.40
codegen_flags: <defaults>
</compile_context>

<pallas_src>
import math
from functools import partial

import jax
import jax.numpy as jnp
from jax import lax
from jax.experimental import pallas as pl
from jax.experimental.pallas import tpu as pltpu


# ------------------------------ Pallas kernel ------------------------------ #

def _fused_attention_kernel(q_ref, k_ref, v_ref, wq_ref, wk_ref, wv_ref,
                            wo_ref, bo_ref, o_ref, *, n_batch, q_len, kv_len,
                            n_heads, d_head):
    """Fused per-tile kernel: head projections + attention + out projection.

    q_ref        : (n_batch*q_len,  D) flattened query rows, D = n_heads*d_head
    k_ref/v_ref  : (n_batch*kv_len, D) flattened key / value rows
    wq/wk/wv_ref : (D, D) block-diagonal, pre-transposed bf16 head projections
                   (softmax scale folded into wq)
    wo_ref       : (D, D) pre-transposed bf16 output projection (wo.T)
    bo_ref       : (1, D) f32 output projection bias
    o_ref        : (n_batch*q_len, D) lane-dense output slab
    """
    D = q_ref.shape[1]

    # All-head projections as a few large bf16 MXU matmuls, f32 accumulation.
    qp = jnp.dot(q_ref[...].astype(jnp.bfloat16), wq_ref[...],
                 preferred_element_type=jnp.float32).astype(jnp.bfloat16)
    kp = jnp.dot(k_ref[...].astype(jnp.bfloat16), wk_ref[...],
                 preferred_element_type=jnp.float32).astype(jnp.bfloat16)
    vp = jnp.dot(v_ref[...].astype(jnp.bfloat16), wv_ref[...],
                 preferred_element_type=jnp.float32).astype(jnp.bfloat16)

    bo = bo_ref[...]                                      # (1, D) f32

    for b in range(n_batch):            # static unroll over packed batch rows
        qb = qp[b * q_len:(b + 1) * q_len, :]             # (q_len, D)
        kb = kp[b * kv_len:(b + 1) * kv_len, :]           # (kv_len, D)
        vb = vp[b * kv_len:(b + 1) * kv_len, :]           # (kv_len, D)

        out_acc = jnp.zeros((q_len, D), jnp.float32)
        for h in range(n_heads):        # static unroll over heads
            lo = h * d_head
            qh = qb[:, lo:lo + d_head]                    # (q_len, dh)
            kh = kb[:, lo:lo + d_head]                    # (kv_len, dh)
            vh = vb[:, lo:lo + d_head]                    # (kv_len, dh)

            # Q K^T contracting the feature dim (no in-kernel transpose);
            # 1/sqrt(d_head) is already folded into the query projection.
            scores = lax.dot_general(qh, kh, (((1,), (1,)), ((), ())),
                                     preferred_element_type=jnp.float32)
            m = jnp.max(scores, axis=-1, keepdims=True)
            p = jnp.exp(scores - m)
            inv_l = pl.reciprocal(jnp.sum(p, axis=-1, keepdims=True),
                                  approx=True)

            # Deferred softmax normalization: un-normalized P @ V, then scale
            # the (q_len, d_head) context instead of the (q_len, S) probs.
            ctx = jnp.dot(p.astype(jnp.bfloat16), vh,
                          preferred_element_type=jnp.float32)
            ctx = (ctx * inv_l).astype(jnp.bfloat16)

            # Accumulate this head straight into the output projection via a
            # sublane row-slice of wo.T (no lane-axis concat of head outputs).
            out_acc = out_acc + jnp.dot(ctx, wo_ref[lo:lo + d_head, :],
                                        preferred_element_type=jnp.float32)

        o_ref[b * q_len:(b + 1) * q_len, :] = (out_acc + bo).astype(o_ref.dtype)


# --------------------------------- wrapper ---------------------------------- #

def attention_layer(queries, keys, values, params, n_heads, *,
                    block_l=None, block_b=None):
    """Pallas implementation of AttentionLayer.forward (attn_mask=None, eval)."""
    B, L, d_model = queries.shape
    _, S, _ = keys.shape
    H = n_heads

    # The PyTorch module reshapes values with L and attends over S keys,
    # implicitly requiring value length == key length == query length.
    if values.shape[1] != L or S != L:
        raise ValueError("AttentionLayer requires query/key/value lengths to match (L == S).")

    wq, wk, wv = params["wq"], params["wk"], params["wv"]
    wo, bo = params["wo"], params["bo"]
    dv = wq.shape[0]
    assert H * dv == d_model, "expects d_keys = d_values = d_model // n_heads"
    D = d_model

    # ---- tile selection over the flattened (B*L, D) / (B*S, D) row views ----
    if block_l is None:
        # ~256 is a good starting point on v7x (64 MiB VMEM); v5e/v6e can go
        # larger (512-1024) -- override via block_l if needed.
        block_l = L if L <= 512 else 512
    if L % block_l != 0:
        block_l = L
    if block_b is None:
        # Pack several batch elements into one grid step when each element is
        # tiny (toy configs: fewer grid steps, bigger MXU ops); production
        # shapes use one batch element per step.
        block_b = B if (block_l == L and L * D <= 128 * 128) else 1
    if B % block_b != 0 or (block_b > 1 and block_l != L):
        block_b = 1

    def _rows_ok(rows, total):   # (8,128) rule on the flattened row blocks
        return rows == total or rows % 8 == 0

    if not (_rows_ok(block_b * block_l, B * L) and _rows_ok(block_b * S, B * S)):
        block_b, block_l = B, L          # single full block: always layout-legal

    nl = L // block_l

    # ---- wrapper-side layout plumbing (constant-foldable under jit) ----
    # Block-diagonal W.T so the shared per-head Linear applies to all heads of
    # the (rows, H*dv) slab as one matmul; softmax scale folded into wq; bf16
    # weights for native MXU rate and half the weight VMEM/DMA footprint.
    # TODO(synk): cache / jit this so the kron is not rebuilt every forward.
    scale = 1.0 / math.sqrt(dv)
    eye_h = jnp.eye(H, dtype=jnp.float32)
    wq_bd = jnp.kron(eye_h, wq.T.astype(jnp.float32) * scale).astype(jnp.bfloat16)
    wk_bd = jnp.kron(eye_h, wk.T.astype(jnp.float32)).astype(jnp.bfloat16)
    wv_bd = jnp.kron(eye_h, wv.T.astype(jnp.float32)).astype(jnp.bfloat16)
    wo_t = wo.T.astype(jnp.bfloat16)                     # (H*dv, d_model)
    bo_row = bo.reshape(1, D).astype(jnp.float32)

    q2 = queries.reshape(B * L, D)
    k2 = keys.reshape(B * S, D)
    v2 = values.reshape(B * S, D)

    kernel = partial(_fused_attention_kernel, n_batch=block_b, q_len=block_l,
                     kv_len=S, n_heads=H, d_head=dv)

    # Derive a per-generation VMEM limit with ~25% headroom (never request the
    # whole physical VMEM, which matters on v7x's 64 MiB).
    vmem_kw = {}
    try:
        cap = pltpu.get_tpu_info().vmem_capacity_bytes
        vmem_kw["vmem_limit_bytes"] = int(cap * 3 // 4)
    except Exception:
        pass

    def _weight_spec(shape, single_buffer):
        if single_buffer:
            # Grid-invariant inputs: single-buffer them to save VMEM.
            return pl.BlockSpec(shape, lambda b, l: (0, 0),
                                pipeline_mode=pl.Buffered(buffer_count=1))
        return pl.BlockSpec(shape, lambda b, l: (0, 0))

    def _call(single_buffer_weights):
        return pl.pallas_call(
            kernel,
            out_shape=jax.ShapeDtypeStruct((B * L, D), queries.dtype),
            grid=(B // block_b, nl),
            in_specs=[
                pl.BlockSpec((block_b * block_l, D), lambda b, l: (b * nl + l, 0)),
                pl.BlockSpec((block_b * S, D), lambda b, l: (b, 0)),
                pl.BlockSpec((block_b * S, D), lambda b, l: (b, 0)),
                _weight_spec((D, D), single_buffer_weights),   # wq (block-diag, scaled)
                _weight_spec((D, D), single_buffer_weights),   # wk
                _weight_spec((D, D), single_buffer_weights),   # wv
                _weight_spec((D, D), single_buffer_weights),   # wo.T
                _weight_spec((1, D), single_buffer_weights),   # bo
            ],
            out_specs=pl.BlockSpec((block_b * block_l, D),
                                   lambda b, l: (b * nl + l, 0)),
            compiler_params=pltpu.CompilerParams(
                dimension_semantics=("parallel", "parallel"), **vmem_kw),
        )(q2, k2, v2, wq_bd, wk_bd, wv_bd, wo_t, bo_row)

    try:
        out2 = _call(True)
    except Exception:
        # pipeline_mode=pl.Buffered(1) not supported on this jax version /
        # backend: fall back to default (double-buffered) weight windows.
        out2 = _call(False)

    return out2.reshape(B, L, D)


# --------------------------- pure-JAX reference ---------------------------- #

def _reference(queries, keys, values, params, n_heads):
    B, L, _ = queries.shape
    _, S, _ = keys.shape
    H = n_heads
    v4 = values.reshape(B, L, H, -1)
    k4 = keys.reshape(B, S, H, -1)
    q4 = queries.reshape(B, L, H, -1)
    dv = q4.shape[-1]
    qp = jnp.einsum("blhe,fe->blhf", q4, params["wq"])
    kp = jnp.einsum("bshe,fe->bshf", k4, params["wk"])
    vp = jnp.einsum("bshe,fe->bshf", v4, params["wv"])
    scale = 1.0 / math.sqrt(dv)
    scores = jnp.einsum("blhe,bshe->bhls", qp, kp) * scale
    attn = jax.nn.softmax(scores, axis=-1)
    out = jnp.einsum("bhls,bshd->blhd", attn, vp).reshape(B, L, H * dv)
    return jnp.einsum("blf,df->bld", out, params["wo"]) + params["bo"]


# ----------------------------------- main ----------------------------------- #

if __name__ == "__main__":
    B, L, S = 2, 8, 8
    n_heads = 4
    d_model = 32
    d_values = d_model // n_heads  # 8

    key = jax.random.PRNGKey(0)
    kq, kk, kv, kwq, kwk, kwv, kwo, kbo = jax.random.split(key, 8)

    queries = jax.random.normal(kq, (B, L, d_model), jnp.float32)
    keys = jax.random.normal(kk, (B, S, d_model), jnp.float32)
    values = jax.random.normal(kv, (B, S, d_model), jnp.float32)

    # Deterministic synthetic parameters (shapes match nn.Linear weights).
    s_in = 1.0 / math.sqrt(d_values)
    s_out = 1.0 / math.sqrt(d_values * n_heads)
    params = {
        "wq": jax.random.uniform(kwq, (d_values, d_values), jnp.float32, -s_in, s_in),
        "wk": jax.random.uniform(kwk, (d_values, d_values), jnp.float32, -s_in, s_in),
        "wv": jax.random.uniform(kwv, (d_values, d_values), jnp.float32, -s_in, s_in),
        "wo": jax.random.uniform(kwo, (d_model, d_values * n_heads), jnp.float32, -s_out, s_out),
        "bo": jax.random.uniform(kbo, (d_model,), jnp.float32, -s_out, s_out),
    }

    out = jax.block_until_ready(
        attention_layer(queries, keys, values, params, n_heads))
    ref = _reference(queries, keys, values, params, n_heads)

    assert out.shape == (B, L, d_model)
    # bf16 MXU operands throughout (f32 accumulation) + approx reciprocal ->
    # looser tolerance than a pure-f32 comparison (inference-grade accuracy).
    max_err = float(jnp.max(jnp.abs(out - ref)))
    assert jnp.allclose(out, ref, atol=3e-2, rtol=3e-2), (
        f"mismatch vs reference (max abs err {max_err:.4f})")
    print("KERNEL_OK")
</pallas_src>

<mosaic_0001>
module attributes {stable_mosaic.version = 11 : i64} {
  func.func @_fused_attention_kernel(%arg0: i32, %arg1: i32, %arg2: memref<16x32xf32, #tpu.memory_space<vmem>>, %arg3: memref<16x32xf32, #tpu.memory_space<vmem>>, %arg4: memref<16x32xf32, #tpu.memory_space<vmem>>, %arg5: memref<32x32xbf16, #tpu.memory_space<vmem>>, %arg6: memref<32x32xbf16, #tpu.memory_space<vmem>>, %arg7: memref<32x32xbf16, #tpu.memory_space<vmem>>, %arg8: memref<32x32xbf16, #tpu.memory_space<vmem>>, %arg9: memref<1x32xf32, #tpu.memory_space<vmem>>, %arg10: memref<16x32xf32, #tpu.memory_space<vmem>>) attributes {dimension_semantics = [#tpu.dimension_semantics<parallel>, #tpu.dimension_semantics<parallel>], iteration_bounds = array<i64: 1, 1>, scalar_prefetch = 0 : i64, scratch_operands = 0 : i64, tpu.core_type = #tpu.core_type<tc>, window_params = [{transform_indices = @transform_0, window_bounds = array<i64: 16, 32>}, {transform_indices = @transform_1, window_bounds = array<i64: 16, 32>}, {transform_indices = @transform_2, window_bounds = array<i64: 16, 32>}, {pipeline_mode = #tpu.pipeline_mode<synchronous>, transform_indices = @transform_3, window_bounds = array<i64: 32, 32>}, {pipeline_mode = #tpu.pipeline_mode<synchronous>, transform_indices = @transform_4, window_bounds = array<i64: 32, 32>}, {pipeline_mode = #tpu.pipeline_mode<synchronous>, transform_indices = @transform_5, window_bounds = array<i64: 32, 32>}, {pipeline_mode = #tpu.pipeline_mode<synchronous>, transform_indices = @transform_6, window_bounds = array<i64: 32, 32>}, {pipeline_mode = #tpu.pipeline_mode<synchronous>, transform_indices = @transform_7, window_bounds = array<i64: 1, 32>}, {transform_indices = @transform_8, window_bounds = array<i64: 16, 32>}]} {
    %c0 = arith.constant 0 : index
    %c0_0 = arith.constant 0 : index
    %0 = vector.load %arg2[%c0, %c0_0] : memref<16x32xf32, #tpu.memory_space<vmem>>, vector<16x32xf32>
    %1 = arith.truncf %0 : vector<16x32xf32> to vector<16x32xbf16>
    %c0_1 = arith.constant 0 : index
    %c0_2 = arith.constant 0 : index
    %2 = vector.load %arg5[%c0_1, %c0_2] : memref<32x32xbf16, #tpu.memory_space<vmem>>, vector<32x32xbf16>
    %cst = arith.constant dense<0.000000e+00> : vector<16x32xf32>
    %3 = tpu.matmul %1, %2, %cst {dimension_numbers = #tpu.dot_dimension_numbers<[1], [0], [0], [1], [0, 0, 1, 1], [], []>} : vector<16x32xbf16>, vector<32x32xbf16>, vector<16x32xf32> -> vector<16x32xf32>
    %4 = arith.truncf %3 : vector<16x32xf32> to vector<16x32xbf16>
    %c0_3 = arith.constant 0 : index
    %c0_4 = arith.constant 0 : index
    %5 = vector.load %arg3[%c0_3, %c0_4] : memref<16x32xf32, #tpu.memory_space<vmem>>, vector<16x32xf32>
    %6 = arith.truncf %5 : vector<16x32xf32> to vector<16x32xbf16>
    %c0_5 = arith.constant 0 : index
    %c0_6 = arith.constant 0 : index
    %7 = vector.load %arg6[%c0_5, %c0_6] : memref<32x32xbf16, #tpu.memory_space<vmem>>, vector<32x32xbf16>
    %cst_7 = arith.constant dense<0.000000e+00> : vector<16x32xf32>
    %8 = tpu.matmul %6, %7, %cst_7 {dimension_numbers = #tpu.dot_dimension_numbers<[1], [0], [0], [1], [0, 0, 1, 1], [], []>} : vector<16x32xbf16>, vector<32x32xbf16>, vector<16x32xf32> -> vector<16x32xf32>
    %9 = arith.truncf %8 : vector<16x32xf32> to vector<16x32xbf16>
    %c0_8 = arith.constant 0 : index
    %c0_9 = arith.constant 0 : index
    %10 = vector.load %arg4[%c0_8, %c0_9] : memref<16x32xf32, #tpu.memory_space<vmem>>, vector<16x32xf32>
    %11 = arith.truncf %10 : vector<16x32xf32> to vector<16x32xbf16>
    %c0_10 = arith.constant 0 : index
    %c0_11 = arith.constant 0 : index
    %12 = vector.load %arg7[%c0_10, %c0_11] : memref<32x32xbf16, #tpu.memory_space<vmem>>, vector<32x32xbf16>
    %cst_12 = arith.constant dense<0.000000e+00> : vector<16x32xf32>
    %13 = tpu.matmul %11, %12, %cst_12 {dimension_numbers = #tpu.dot_dimension_numbers<[1], [0], [0], [1], [0, 0, 1, 1], [], []>} : vector<16x32xbf16>, vector<32x32xbf16>, vector<16x32xf32> -> vector<16x32xf32>
    %14 = arith.truncf %13 : vector<16x32xf32> to vector<16x32xbf16>
    %c0_13 = arith.constant 0 : index
    %c0_14 = arith.constant 0 : index
    %15 = vector.load %arg9[%c0_13, %c0_14] : memref<1x32xf32, #tpu.memory_space<vmem>>, vector<1x32xf32>
    %16 = vector.extract_strided_slice %4 {offsets = [0, 0], sizes = [8, 32], strides = [1, 1]} : vector<16x32xbf16> to vector<8x32xbf16>
    %17 = vector.extract_strided_slice %9 {offsets = [0, 0], sizes = [8, 32], strides = [1, 1]} : vector<16x32xbf16> to vector<8x32xbf16>
    %18 = vector.extract_strided_slice %14 {offsets = [0, 0], sizes = [8, 32], strides = [1, 1]} : vector<16x32xbf16> to vector<8x32xbf16>
    %cst_15 = arith.constant 0.000000e+00 : f32
    %19 = vector.broadcast %cst_15 : f32 to vector<8x32xf32>
    %20 = vector.extract_strided_slice %16 {offsets = [0, 0], sizes = [8, 8], strides = [1, 1]} : vector<8x32xbf16> to vector<8x8xbf16>
    %21 = vector.extract_strided_slice %17 {offsets = [0, 0], sizes = [8, 8], strides = [1, 1]} : vector<8x32xbf16> to vector<8x8xbf16>
    %22 = vector.extract_strided_slice %18 {offsets = [0, 0], sizes = [8, 8], strides = [1, 1]} : vector<8x32xbf16> to vector<8x8xbf16>
    %cst_16 = arith.constant dense<0.000000e+00> : vector<8x8xf32>
    %23 = tpu.matmul %20, %21, %cst_16 {dimension_numbers = #tpu.dot_dimension_numbers<[1], [1], [0], [0], [0, 0, 1, 0], [], []>} : vector<8x8xbf16>, vector<8x8xbf16>, vector<8x8xf32> -> vector<8x8xf32>
    %cst_17 = arith.constant dense<0xFF800000> : vector<8xf32>
    %24 = vector.multi_reduction <maximumf>, %23, %cst_17 [1] : vector<8x8xf32> to vector<8xf32>
    %25 = vector.shape_cast %24 : vector<8xf32> to vector<8x1xf32>
    %26 = vector.broadcast %25 : vector<8x1xf32> to vector<8x8xf32>
    %27 = arith.subf %23, %26 : vector<8x8xf32>
    %28 = math.exp %27 : vector<8x8xf32>
    %cst_18 = arith.constant dense<0.000000e+00> : vector<8xf32>
    %29 = vector.multi_reduction <add>, %28, %cst_18 [1] : vector<8x8xf32> to vector<8xf32>
    %30 = vector.shape_cast %29 : vector<8xf32> to vector<8x1xf32>
    %31 = tpu.reciprocal %30 {approx = true} : vector<8x1xf32> -> vector<8x1xf32>
    %32 = arith.truncf %28 : vector<8x8xf32> to vector<8x8xbf16>
    %cst_19 = arith.constant dense<0.000000e+00> : vector<8x8xf32>
    %33 = tpu.matmul %32, %22, %cst_19 {dimension_numbers = #tpu.dot_dimension_numbers<[1], [0], [0], [1], [0, 0, 1, 1], [], []>} : vector<8x8xbf16>, vector<8x8xbf16>, vector<8x8xf32> -> vector<8x8xf32>
    %34 = vector.broadcast %31 : vector<8x1xf32> to vector<8x8xf32>
    %35 = arith.mulf %33, %34 : vector<8x8xf32>
    %36 = arith.truncf %35 : vector<8x8xf32> to vector<8x8xbf16>
    %c0_20 = arith.constant 0 : index
    %c0_21 = arith.constant 0 : index
    %37 = vector.load %arg8[%c0_20, %c0_21] : memref<32x32xbf16, #tpu.memory_space<vmem>>, vector<8x32xbf16>
    %cst_22 = arith.constant dense<0.000000e+00> : vector<8x32xf32>
    %38 = tpu.matmul %36, %37, %cst_22 {dimension_numbers = #tpu.dot_dimension_numbers<[1], [0], [0], [1], [0, 0, 1, 1], [], []>} : vector<8x8xbf16>, vector<8x32xbf16>, vector<8x32xf32> -> vector<8x32xf32>
    %39 = arith.addf %19, %38 : vector<8x32xf32>
    %40 = vector.extract_strided_slice %16 {offsets = [0, 8], sizes = [8, 8], strides = [1, 1]} : vector<8x32xbf16> to vector<8x8xbf16>
    %41 = vector.extract_strided_slice %17 {offsets = [0, 8], sizes = [8, 8], strides = [1, 1]} : vector<8x32xbf16> to vector<8x8xbf16>
    %42 = vector.extract_strided_slice %18 {offsets = [0, 8], sizes = [8, 8], strides = [1, 1]} : vector<8x32xbf16> to vector<8x8xbf16>
    %cst_23 = arith.constant dense<0.000000e+00> : vector<8x8xf32>
    %43 = tpu.matmul %40, %41, %cst_23 {dimension_numbers = #tpu.dot_dimension_numbers<[1], [1], [0], [0], [0, 0, 1, 0], [], []>} : vector<8x8xbf16>, vector<8x8xbf16>, vector<8x8xf32> -> vector<8x8xf32>
    %cst_24 = arith.constant dense<0xFF800000> : vector<8xf32>
    %44 = vector.multi_reduction <maximumf>, %43, %cst_24 [1] : vector<8x8xf32> to vector<8xf32>
    %45 = vector.shape_cast %44 : vector<8xf32> to vector<8x1xf32>
    %46 = vector.broadcast %45 : vector<8x1xf32> to vector<8x8xf32>
    %47 = arith.subf %43, %46 : vector<8x8xf32>
    %48 = math.exp %47 : vector<8x8xf32>
    %cst_25 = arith.constant dense<0.000000e+00> : vector<8xf32>
    %49 = vector.multi_reduction <add>, %48, %cst_25 [1] : vector<8x8xf32> to vector<8xf32>
    %50 = vector.shape_cast %49 : vector<8xf32> to vector<8x1xf32>
    %51 = tpu.reciprocal %50 {approx = true} : vector<8x1xf32> -> vector<8x1xf32>
    %52 = arith.truncf %48 : vector<8x8xf32> to vector<8x8xbf16>
    %cst_26 = arith.constant dense<0.000000e+00> : vector<8x8xf32>
    %53 = tpu.matmul %52, %42, %cst_26 {dimension_numbers = #tpu.dot_dimension_numbers<[1], [0], [0], [1], [0, 0, 1, 1], [], []>} : vector<8x8xbf16>, vector<8x8xbf16>, vector<8x8xf32> -> vector<8x8xf32>
    %54 = vector.broadcast %51 : vector<8x1xf32> to vector<8x8xf32>
    %55 = arith.mulf %53, %54 : vector<8x8xf32>
    %56 = arith.truncf %55 : vector<8x8xf32> to vector<8x8xbf16>
    %c8 = arith.constant 8 : index
    %c0_27 = arith.constant 0 : index
    %57 = vector.load %arg8[%c8, %c0_27] : memref<32x32xbf16, #tpu.memory_space<vmem>>, vector<8x32xbf16>
    %cst_28 = arith.constant dense<0.000000e+00> : vector<8x32xf32>
    %58 = tpu.matmul %56, %57, %cst_28 {dimension_numbers = #tpu.dot_dimension_numbers<[1], [0], [0], [1], [0, 0, 1, 1], [], []>} : vector<8x8xbf16>, vector<8x32xbf16>, vector<8x32xf32> -> vector<8x32xf32>
    %59 = arith.addf %39, %58 : vector<8x32xf32>
    %60 = vector.extract_strided_slice %16 {offsets = [0, 16], sizes = [8, 8], strides = [1, 1]} : vector<8x32xbf16> to vector<8x8xbf16>
    %61 = vector.extract_strided_slice %17 {offsets = [0, 16], sizes = [8, 8], strides = [1, 1]} : vector<8x32xbf16> to vector<8x8xbf16>
    %62 = vector.extract_strided_slice %18 {offsets = [0, 16], sizes = [8, 8], strides = [1, 1]} : vector<8x32xbf16> to vector<8x8xbf16>
    %cst_29 = arith.constant dense<0.000000e+00> : vector<8x8xf32>
    %63 = tpu.matmul %60, %61, %cst_29 {dimension_numbers = #tpu.dot_dimension_numbers<[1], [1], [0], [0], [0, 0, 1, 0], [], []>} : vector<8x8xbf16>, vector<8x8xbf16>, vector<8x8xf32> -> vector<8x8xf32>
    %cst_30 = arith.constant dense<0xFF800000> : vector<8xf32>
    %64 = vector.multi_reduction <maximumf>, %63, %cst_30 [1] : vector<8x8xf32> to vector<8xf32>
    %65 = vector.shape_cast %64 : vector<8xf32> to vector<8x1xf32>
    %66 = vector.broadcast %65 : vector<8x1xf32> to vector<8x8xf32>
    %67 = arith.subf %63, %66 : vector<8x8xf32>
    %68 = math.exp %67 : vector<8x8xf32>
    %cst_31 = arith.constant dense<0.000000e+00> : vector<8xf32>
    %69 = vector.multi_reduction <add>, %68, %cst_31 [1] : vector<8x8xf32> to vector<8xf32>
    %70 = vector.shape_cast %69 : vector<8xf32> to vector<8x1xf32>
    %71 = tpu.reciprocal %70 {approx = true} : vector<8x1xf32> -> vector<8x1xf32>
    %72 = arith.truncf %68 : vector<8x8xf32> to vector<8x8xbf16>
    %cst_32 = arith.constant dense<0.000000e+00> : vector<8x8xf32>
    %73 = tpu.matmul %72, %62, %cst_32 {dimension_numbers = #tpu.dot_dimension_numbers<[1], [0], [0], [1], [0, 0, 1, 1], [], []>} : vector<8x8xbf16>, vector<8x8xbf16>, vector<8x8xf32> -> vector<8x8xf32>
    %74 = vector.broadcast %71 : vector<8x1xf32> to vector<8x8xf32>
    %75 = arith.mulf %73, %74 : vector<8x8xf32>
    %76 = arith.truncf %75 : vector<8x8xf32> to vector<8x8xbf16>
    %c16 = arith.constant 16 : index
    %c0_33 = arith.constant 0 : index
    %77 = vector.load %arg8[%c16, %c0_33] : memref<32x32xbf16, #tpu.memory_space<vmem>>, vector<8x32xbf16>
    %cst_34 = arith.constant dense<0.000000e+00> : vector<8x32xf32>
    %78 = tpu.matmul %76, %77, %cst_34 {dimension_numbers = #tpu.dot_dimension_numbers<[1], [0], [0], [1], [0, 0, 1, 1], [], []>} : vector<8x8xbf16>, vector<8x32xbf16>, vector<8x32xf32> -> vector<8x32xf32>
    %79 = arith.addf %59, %78 : vector<8x32xf32>
    %80 = vector.extract_strided_slice %16 {offsets = [0, 24], sizes = [8, 8], strides = [1, 1]} : vector<8x32xbf16> to vector<8x8xbf16>
    %81 = vector.extract_strided_slice %17 {offsets = [0, 24], sizes = [8, 8], strides = [1, 1]} : vector<8x32xbf16> to vector<8x8xbf16>
    %82 = vector.extract_strided_slice %18 {offsets = [0, 24], sizes = [8, 8], strides = [1, 1]} : vector<8x32xbf16> to vector<8x8xbf16>
    %cst_35 = arith.constant dense<0.000000e+00> : vector<8x8xf32>
    %83 = tpu.matmul %80, %81, %cst_35 {dimension_numbers = #tpu.dot_dimension_numbers<[1], [1], [0], [0], [0, 0, 1, 0], [], []>} : vector<8x8xbf16>, vector<8x8xbf16>, vector<8x8xf32> -> vector<8x8xf32>
    %cst_36 = arith.constant dense<0xFF800000> : vector<8xf32>
    %84 = vector.multi_reduction <maximumf>, %83, %cst_36 [1] : vector<8x8xf32> to vector<8xf32>
    %85 = vector.shape_cast %84 : vector<8xf32> to vector<8x1xf32>
    %86 = vector.broadcast %85 : vector<8x1xf32> to vector<8x8xf32>
    %87 = arith.subf %83, %86 : vector<8x8xf32>
    %88 = math.exp %87 : vector<8x8xf32>
    %cst_37 = arith.constant dense<0.000000e+00> : vector<8xf32>
    %89 = vector.multi_reduction <add>, %88, %cst_37 [1] : vector<8x8xf32> to vector<8xf32>
    %90 = vector.shape_cast %89 : vector<8xf32> to vector<8x1xf32>
    %91 = tpu.reciprocal %90 {approx = true} : vector<8x1xf32> -> vector<8x1xf32>
    %92 = arith.truncf %88 : vector<8x8xf32> to vector<8x8xbf16>
    %cst_38 = arith.constant dense<0.000000e+00> : vector<8x8xf32>
    %93 = tpu.matmul %92, %82, %cst_38 {dimension_numbers = #tpu.dot_dimension_numbers<[1], [0], [0], [1], [0, 0, 1, 1], [], []>} : vector<8x8xbf16>, vector<8x8xbf16>, vector<8x8xf32> -> vector<8x8xf32>
    %94 = vector.broadcast %91 : vector<8x1xf32> to vector<8x8xf32>
    %95 = arith.mulf %93, %94 : vector<8x8xf32>
    %96 = arith.truncf %95 : vector<8x8xf32> to vector<8x8xbf16>
    %c24 = arith.constant 24 : index
    %c0_39 = arith.constant 0 : index
    %97 = vector.load %arg8[%c24, %c0_39] : memref<32x32xbf16, #tpu.memory_space<vmem>>, vector<8x32xbf16>
    %cst_40 = arith.constant dense<0.000000e+00> : vector<8x32xf32>
    %98 = tpu.matmul %96, %97, %cst_40 {dimension_numbers = #tpu.dot_dimension_numbers<[1], [0], [0], [1], [0, 0, 1, 1], [], []>} : vector<8x8xbf16>, vector<8x32xbf16>, vector<8x32xf32> -> vector<8x32xf32>
    %99 = arith.addf %79, %98 : vector<8x32xf32>
    %100 = vector.broadcast %15 : vector<1x32xf32> to vector<8x32xf32>
    %101 = arith.addf %99, %100 : vector<8x32xf32>
    %c0_41 = arith.constant 0 : index
    %c0_42 = arith.constant 0 : index
    %102 = vector.load %arg10[%c0_41, %c0_42] : memref<16x32xf32, #tpu.memory_space<vmem>>, vector<8x32xf32>
    tpu.vector_store %arg10[%c0_41, %c0_42], %101 {strides = array<i32>} : memref<16x32xf32, #tpu.memory_space<vmem>>, vector<8x32xf32>,
    %103 = vector.extract_strided_slice %4 {offsets = [8, 0], sizes = [8, 32], strides = [1, 1]} : vector<16x32xbf16> to vector<8x32xbf16>
    %104 = vector.extract_strided_slice %9 {offsets = [8, 0], sizes = [8, 32], strides = [1, 1]} : vector<16x32xbf16> to vector<8x32xbf16>
    %105 = vector.extract_strided_slice %14 {offsets = [8, 0], sizes = [8, 32], strides = [1, 1]} : vector<16x32xbf16> to vector<8x32xbf16>
    %cst_43 = arith.constant 0.000000e+00 : f32
    %106 = vector.broadcast %cst_43 : f32 to vector<8x32xf32>
    %107 = vector.extract_strided_slice %103 {offsets = [0, 0], sizes = [8, 8], strides = [1, 1]} : vector<8x32xbf16> to vector<8x8xbf16>
    %108 = vector.extract_strided_slice %104 {offsets = [0, 0], sizes = [8, 8], strides = [1, 1]} : vector<8x32xbf16> to vector<8x8xbf16>
    %109 = vector.extract_strided_slice %105 {offsets = [0, 0], sizes = [8, 8], strides = [1, 1]} : vector<8x32xbf16> to vector<8x8xbf16>
    %cst_44 = arith.constant dense<0.000000e+00> : vector<8x8xf32>
    %110 = tpu.matmul %107, %108, %cst_44 {dimension_numbers = #tpu.dot_dimension_numbers<[1], [1], [0], [0], [0, 0, 1, 0], [], []>} : vector<8x8xbf16>, vector<8x8xbf16>, vector<8x8xf32> -> vector<8x8xf32>
    %cst_45 = arith.constant dense<0xFF800000> : vector<8xf32>
    %111 = vector.multi_reduction <maximumf>, %110, %cst_45 [1] : vector<8x8xf32> to vector<8xf32>
    %112 = vector.shape_cast %111 : vector<8xf32> to vector<8x1xf32>
    %113 = vector.broadcast %112 : vector<8x1xf32> to vector<8x8xf32>
    %114 = arith.subf %110, %113 : vector<8x8xf32>
    %115 = math.exp %114 : vector<8x8xf32>
    %cst_46 = arith.constant dense<0.000000e+00> : vector<8xf32>
    %116 = vector.multi_reduction <add>, %115, %cst_46 [1] : vector<8x8xf32> to vector<8xf32>
    %117 = vector.shape_cast %116 : vector<8xf32> to vector<8x1xf32>
    %118 = tpu.reciprocal %117 {approx = true} : vector<8x1xf32> -> vector<8x1xf32>
    %119 = arith.truncf %115 : vector<8x8xf32> to vector<8x8xbf16>
    %cst_47 = arith.constant dense<0.000000e+00> : vector<8x8xf32>
    %120 = tpu.matmul %119, %109, %cst_47 {dimension_numbers = #tpu.dot_dimension_numbers<[1], [0], [0], [1], [0, 0, 1, 1], [], []>} : vector<8x8xbf16>, vector<8x8xbf16>, vector<8x8xf32> -> vector<8x8xf32>
    %121 = vector.broadcast %118 : vector<8x1xf32> to vector<8x8xf32>
    %122 = arith.mulf %120, %121 : vector<8x8xf32>
    %123 = arith.truncf %122 : vector<8x8xf32> to vector<8x8xbf16>
    %c0_48 = arith.constant 0 : index
    %c0_49 = arith.constant 0 : index
    %124 = vector.load %arg8[%c0_48, %c0_49] : memref<32x32xbf16, #tpu.memory_space<vmem>>, vector<8x32xbf16>
    %cst_50 = arith.constant dense<0.000000e+00> : vector<8x32xf32>
    %125 = tpu.matmul %123, %124, %cst_50 {dimension_numbers = #tpu.dot_dimension_numbers<[1], [0], [0], [1], [0, 0, 1, 1], [], []>} : vector<8x8xbf16>, vector<8x32xbf16>, vector<8x32xf32> -> vector<8x32xf32>
    %126 = arith.addf %106, %125 : vector<8x32xf32>
    %127 = vector.extract_strided_slice %103 {offsets = [0, 8], sizes = [8, 8], strides = [1, 1]} : vector<8x32xbf16> to vector<8x8xbf16>
    %128 = vector.extract_strided_slice %104 {offsets = [0, 8], sizes = [8, 8], strides = [1, 1]} : vector<8x32xbf16> to vector<8x8xbf16>
    %129 = vector.extract_strided_slice %105 {offsets = [0, 8], sizes = [8, 8], strides = [1, 1]} : vector<8x32xbf16> to vector<8x8xbf16>
    %cst_51 = arith.constant dense<0.000000e+00> : vector<8x8xf32>
    %130 = tpu.matmul %127, %128, %cst_51 {dimension_numbers = #tpu.dot_dimension_numbers<[1], [1], [0], [0], [0, 0, 1, 0], [], []>} : vector<8x8xbf16>, vector<8x8xbf16>, vector<8x8xf32> -> vector<8x8xf32>
    %cst_52 = arith.constant dense<0xFF800000> : vector<8xf32>
    %131 = vector.multi_reduction <maximumf>, %130, %cst_52 [1] : vector<8x8xf32> to vector<8xf32>
    %132 = vector.shape_cast %131 : vector<8xf32> to vector<8x1xf32>
    %133 = vector.broadcast %132 : vector<8x1xf32> to vector<8x8xf32>
    %134 = arith.subf %130, %133 : vector<8x8xf32>
    %135 = math.exp %134 : vector<8x8xf32>
    %cst_53 = arith.constant dense<0.000000e+00> : vector<8xf32>
    %136 = vector.multi_reduction <add>, %135, %cst_53 [1] : vector<8x8xf32> to vector<8xf32>
    %137 = vector.shape_cast %136 : vector<8xf32> to vector<8x1xf32>
    %138 = tpu.reciprocal %137 {approx = true} : vector<8x1xf32> -> vector<8x1xf32>
    %139 = arith.truncf %135 : vector<8x8xf32> to vector<8x8xbf16>
    %cst_54 = arith.constant dense<0.000000e+00> : vector<8x8xf32>
    %140 = tpu.matmul %139, %129, %cst_54 {dimension_numbers = #tpu.dot_dimension_numbers<[1], [0], [0], [1], [0, 0, 1, 1], [], []>} : vector<8x8xbf16>, vector<8x8xbf16>, vector<8x8xf32> -> vector<8x8xf32>
    %141 = vector.broadcast %138 : vector<8x1xf32> to vector<8x8xf32>
    %142 = arith.mulf %140, %141 : vector<8x8xf32>
    %143 = arith.truncf %142 : vector<8x8xf32> to vector<8x8xbf16>
    %c8_55 = arith.constant 8 : index
    %c0_56 = arith.constant 0 : index
    %144 = vector.load %arg8[%c8_55, %c0_56] : memref<32x32xbf16, #tpu.memory_space<vmem>>, vector<8x32xbf16>
    %cst_57 = arith.constant dense<0.000000e+00> : vector<8x32xf32>
    %145 = tpu.matmul %143, %144, %cst_57 {dimension_numbers = #tpu.dot_dimension_numbers<[1], [0], [0], [1], [0, 0, 1, 1], [], []>} : vector<8x8xbf16>, vector<8x32xbf16>, vector<8x32xf32> -> vector<8x32xf32>
    %146 = arith.addf %126, %145 : vector<8x32xf32>
    %147 = vector.extract_strided_slice %103 {offsets = [0, 16], sizes = [8, 8], strides = [1, 1]} : vector<8x32xbf16> to vector<8x8xbf16>
    %148 = vector.extract_strided_slice %104 {offsets = [0, 16], sizes = [8, 8], strides = [1, 1]} : vector<8x32xbf16> to vector<8x8xbf16>
    %149 = vector.extract_strided_slice %105 {offsets = [0, 16], sizes = [8, 8], strides = [1, 1]} : vector<8x32xbf16> to vector<8x8xbf16>
    %cst_58 = arith.constant dense<0.000000e+00> : vector<8x8xf32>
    %150 = tpu.matmul %147, %148, %cst_58 {dimension_numbers = #tpu.dot_dimension_numbers<[1], [1], [0], [0], [0, 0, 1, 0], [], []>} : vector<8x8xbf16>, vector<8x8xbf16>, vector<8x8xf32> -> vector<8x8xf32>
    %cst_59 = arith.constant dense<0xFF800000> : vector<8xf32>
    %151 = vector.multi_reduction <maximumf>, %150, %cst_59 [1] : vector<8x8xf32> to vector<8xf32>
    %152 = vector.shape_cast %151 : vector<8xf32> to vector<8x1xf32>
    %153 = vector.broadcast %152 : vector<8x1xf32> to vector<8x8xf32>
    %154 = arith.subf %150, %153 : vector<8x8xf32>
    %155 = math.exp %154 : vector<8x8xf32>
    %cst_60 = arith.constant dense<0.000000e+00> : vector<8xf32>
    %156 = vector.multi_reduction <add>, %155, %cst_60 [1] : vector<8x8xf32> to vector<8xf32>
    %157 = vector.shape_cast %156 : vector<8xf32> to vector<8x1xf32>
    %158 = tpu.reciprocal %157 {approx = true} : vector<8x1xf32> -> vector<8x1xf32>
    %159 = arith.truncf %155 : vector<8x8xf32> to vector<8x8xbf16>
    %cst_61 = arith.constant dense<0.000000e+00> : vector<8x8xf32>
    %160 = tpu.matmul %159, %149, %cst_61 {dimension_numbers = #tpu.dot_dimension_numbers<[1], [0], [0], [1], [0, 0, 1, 1], [], []>} : vector<8x8xbf16>, vector<8x8xbf16>, vector<8x8xf32> -> vector<8x8xf32>
    %161 = vector.broadcast %158 : vector<8x1xf32> to vector<8x8xf32>
    %162 = arith.mulf %160, %161 : vector<8x8xf32>
    %163 = arith.truncf %162 : vector<8x8xf32> to vector<8x8xbf16>
    %c16_62 = arith.constant 16 : index
    %c0_63 = arith.constant 0 : index
    %164 = vector.load %arg8[%c16_62, %c0_63] : memref<32x32xbf16, #tpu.memory_space<vmem>>, vector<8x32xbf16>
    %cst_64 = arith.constant dense<0.000000e+00> : vector<8x32xf32>
    %165 = tpu.matmul %163, %164, %cst_64 {dimension_numbers = #tpu.dot_dimension_numbers<[1], [0], [0], [1], [0, 0, 1, 1], [], []>} : vector<8x8xbf16>, vector<8x32xbf16>, vector<8x32xf32> -> vector<8x32xf32>
    %166 = arith.addf %146, %165 : vector<8x32xf32>
    %167 = vector.extract_strided_slice %103 {offsets = [0, 24], sizes = [8, 8], strides = [1, 1]} : vector<8x32xbf16> to vector<8x8xbf16>
    %168 = vector.extract_strided_slice %104 {offsets = [0, 24], sizes = [8, 8], strides = [1, 1]} : vector<8x32xbf16> to vector<8x8xbf16>
    %169 = vector.extract_strided_slice %105 {offsets = [0, 24], sizes = [8, 8], strides = [1, 1]} : vector<8x32xbf16> to vector<8x8xbf16>
    %cst_65 = arith.constant dense<0.000000e+00> : vector<8x8xf32>
    %170 = tpu.matmul %167, %168, %cst_65 {dimension_numbers = #tpu.dot_dimension_numbers<[1], [1], [0], [0], [0, 0, 1, 0], [], []>} : vector<8x8xbf16>, vector<8x8xbf16>, vector<8x8xf32> -> vector<8x8xf32>
    %cst_66 = arith.constant dense<0xFF800000> : vector<8xf32>
    %171 = vector.multi_reduction <maximumf>, %170, %cst_66 [1] : vector<8x8xf32> to vector<8xf32>
    %172 = vector.shape_cast %171 : vector<8xf32> to vector<8x1xf32>
    %173 = vector.broadcast %172 : vector<8x1xf32> to vector<8x8xf32>
    %174 = arith.subf %170, %173 : vector<8x8xf32>
    %175 = math.exp %174 : vector<8x8xf32>
    %cst_67 = arith.constant dense<0.000000e+00> : vector<8xf32>
    %176 = vector.multi_reduction <add>, %175, %cst_67 [1] : vector<8x8xf32> to vector<8xf32>
    %177 = vector.shape_cast %176 : vector<8xf32> to vector<8x1xf32>
    %178 = tpu.reciprocal %177 {approx = true} : vector<8x1xf32> -> vector<8x1xf32>
    %179 = arith.truncf %175 : vector<8x8xf32> to vector<8x8xbf16>
    %cst_68 = arith.constant dense<0.000000e+00> : vector<8x8xf32>
    %180 = tpu.matmul %179, %169, %cst_68 {dimension_numbers = #tpu.dot_dimension_numbers<[1], [0], [0], [1], [0, 0, 1, 1], [], []>} : vector<8x8xbf16>, vector<8x8xbf16>, vector<8x8xf32> -> vector<8x8xf32>
    %181 = vector.broadcast %178 : vector<8x1xf32> to vector<8x8xf32>
    %182 = arith.mulf %180, %181 : vector<8x8xf32>
    %183 = arith.truncf %182 : vector<8x8xf32> to vector<8x8xbf16>
    %c24_69 = arith.constant 24 : index
    %c0_70 = arith.constant 0 : index
    %184 = vector.load %arg8[%c24_69, %c0_70] : memref<32x32xbf16, #tpu.memory_space<vmem>>, vector<8x32xbf16>
    %cst_71 = arith.constant dense<0.000000e+00> : vector<8x32xf32>
    %185 = tpu.matmul %183, %184, %cst_71 {dimension_numbers = #tpu.dot_dimension_numbers<[1], [0], [0], [1], [0, 0, 1, 1], [], []>} : vector<8x8xbf16>, vector<8x32xbf16>, vector<8x32xf32> -> vector<8x32xf32>
    %186 = arith.addf %166, %185 : vector<8x32xf32>
    %187 = vector.broadcast %15 : vector<1x32xf32> to vector<8x32xf32>
    %188 = arith.addf %186, %187 : vector<8x32xf32>
    %c8_72 = arith.constant 8 : index
    %c0_73 = arith.constant 0 : index
    %189 = vector.load %arg10[%c8_72, %c0_73] : memref<16x32xf32, #tpu.memory_space<vmem>>, vector<8x32xf32>
    tpu.vector_store %arg10[%c8_72, %c0_73], %188 {strides = array<i32>} : memref<16x32xf32, #tpu.memory_space<vmem>>, vector<8x32xf32>,
    return
  }
  func.func @transform_0(%arg0: i32, %arg1: i32) -> (i32, i32) {
    %c1_i32 = arith.constant 1 : i32
    %0 = arith.muli %arg0, %c1_i32 : i32
    %1 = arith.addi %0, %arg1 : i32
    %c0_i32 = arith.constant 0 : i32
    %c0_i32_0 = arith.constant 0 : i32
    return %1, %c0_i32 : i32, i32
  }
  func.func @transform_1(%arg0: i32, %arg1: i32) -> (i32, i32) {
    %c0_i32 = arith.constant 0 : i32
    %c0_i32_0 = arith.constant 0 : i32
    return %arg0, %c0_i32 : i32, i32
  }
  func.func @transform_2(%arg0: i32, %arg1: i32) -> (i32, i32) {
    %c0_i32 = arith.constant 0 : i32
    %c0_i32_0 = arith.constant 0 : i32
    return %arg0, %c0_i32 : i32, i32
  }
  func.func @transform_3(%arg0: i32, %arg1: i32) -> (i32, i32) {
    %c0_i32 = arith.constant 0 : i32
    %c0_i32_0 = arith.constant 0 : i32
    %c0_i32_1 = arith.constant 0 : i32
    return %c0_i32, %c0_i32_0 : i32, i32
  }
  func.func @transform_4(%arg0: i32, %arg1: i32) -> (i32, i32) {
    %c0_i32 = arith.constant 0 : i32
    %c0_i32_0 = arith.constant 0 : i32
    %c0_i32_1 = arith.constant 0 : i32
    return %c0_i32, %c0_i32_0 : i32, i32
  }
  func.func @transform_5(%arg0: i32, %arg1: i32) -> (i32, i32) {
    %c0_i32 = arith.constant 0 : i32
    %c0_i32_0 = arith.constant 0 : i32
    %c0_i32_1 = arith.constant 0 : i32
    return %c0_i32, %c0_i32_0 : i32, i32
  }
  func.func @transform_6(%arg0: i32, %arg1: i32) -> (i32, i32) {
    %c0_i32 = arith.constant 0 : i32
    %c0_i32_0 = arith.constant 0 : i32
    %c0_i32_1 = arith.constant 0 : i32
    return %c0_i32, %c0_i32_0 : i32, i32
  }
  func.func @transform_7(%arg0: i32, %arg1: i32) -> (i32, i32) {
    %c0_i32 = arith.constant 0 : i32
    %c0_i32_0 = arith.constant 0 : i32
    %c0_i32_1 = arith.constant 0 : i32
    return %c0_i32, %c0_i32_0 : i32, i32
  }
  func.func @transform_8(%arg0: i32, %arg1: i32) -> (i32, i32) {
    %c1_i32 = arith.constant 1 : i32
    %0 = arith.muli %arg0, %c1_i32 : i32
    %1 = arith.addi %0, %arg1 : i32
    %c0_i32 = arith.constant 0 : i32
    %c0_i32_0 = arith.constant 0 : i32
    return %1, %c0_i32 : i32, i32
  }
}

module attributes {stable_mosaic.version = 11 : i64} {
  func.func @_fused_attention_kernel(%arg0: i32, %arg1: i32, %arg2: memref<16x32xf32, #tpu.memory_space<vmem>>, %arg3: memref<16x32xf32, #tpu.memory_space<vmem>>, %arg4: memref<16x32xf32, #tpu.memory_space<vmem>>, %arg5: memref<32x32xbf16, #tpu.memory_space<vmem>>, %arg6: memref<32x32xbf16, #tpu.memory_space<vmem>>, %arg7: memref<32x32xbf16, #tpu.memory_space<vmem>>, %arg8: memref<32x32xbf16, #tpu.memory_space<vmem>>, %arg9: memref<1x32xf32, #tpu.memory_space<vmem>>, %arg10: memref<16x32xf32, #tpu.memory_space<vmem>>) attributes {dimension_semantics = [#tpu.dimension_semantics<parallel>, #tpu.dimension_semantics<parallel>], iteration_bounds = array<i64: 1, 1>, scalar_prefetch = 0 : i64, scratch_operands = 0 : i64, tpu.core_type = #tpu.core_type<tc>, window_params = [{transform_indices = @transform_0, window_bounds = array<i64: 16, 32>}, {transform_indices = @transform_1, window_bounds = array<i64: 16, 32>}, {transform_indices = @transform_2, window_bounds = array<i64: 16, 32>}, {pipeline_mode = #tpu.pipeline_mode<synchronous>, transform_indices = @transform_3, window_bounds = array<i64: 32, 32>}, {pipeline_mode = #tpu.pipeline_mode<synchronous>, transform_indices = @transform_4, window_bounds = array<i64: 32, 32>}, {pipeline_mode = #tpu.pipeline_mode<synchronous>, transform_indices = @transform_5, window_bounds = array<i64: 32, 32>}, {pipeline_mode = #tpu.pipeline_mode<synchronous>, transform_indices = @transform_6, window_bounds = array<i64: 32, 32>}, {pipeline_mode = #tpu.pipeline_mode<synchronous>, transform_indices = @transform_7, window_bounds = array<i64: 1, 32>}, {transform_indices = @transform_8, window_bounds = array<i64: 16, 32>}]} {
    %c0 = arith.constant 0 : index
    %c0_0 = arith.constant 0 : index
    %0 = vector.load %arg2[%c0, %c0_0] : memref<16x32xf32, #tpu.memory_space<vmem>>, vector<16x32xf32>
    %1 = arith.truncf %0 : vector<16x32xf32> to vector<16x32xbf16>
    %c0_1 = arith.constant 0 : index
    %c0_2 = arith.constant 0 : index
    %2 = vector.load %arg5[%c0_1, %c0_2] : memref<32x32xbf16, #tpu.memory_space<vmem>>, vector<32x32xbf16>
    %cst = arith.constant dense<0.000000e+00> : vector<16x32xf32>
    %3 = tpu.matmul %1, %2, %cst {dimension_numbers = #tpu.dot_dimension_numbers<[1], [0], [0], [1], [0, 0, 1, 1], [], []>} : vector<16x32xbf16>, vector<32x32xbf16>, vector<16x32xf32> -> vector<16x32xf32>
    %4 = arith.truncf %3 : vector<16x32xf32> to vector<16x32xbf16>
    %c0_3 = arith.constant 0 : index
    %c0_4 = arith.constant 0 : index
    %5 = vector.load %arg3[%c0_3, %c0_4] : memref<16x32xf32, #tpu.memory_space<vmem>>, vector<16x32xf32>
    %6 = arith.truncf %5 : vector<16x32xf32> to vector<16x32xbf16>
    %c0_5 = arith.constant 0 : index
    %c0_6 = arith.constant 0 : index
    %7 = vector.load %arg6[%c0_5, %c0_6] : memref<32x32xbf16, #tpu.memory_space<vmem>>, vector<32x32xbf16>
    %cst_7 = arith.constant dense<0.000000e+00> : vector<16x32xf32>
    %8 = tpu.matmul %6, %7, %cst_7 {dimension_numbers = #tpu.dot_dimension_numbers<[1], [0], [0], [1], [0, 0, 1, 1], [], []>} : vector<16x32xbf16>, vector<32x32xbf16>, vector<16x32xf32> -> vector<16x32xf32>
    %9 = arith.truncf %8 : vector<16x32xf32> to vector<16x32xbf16>
    %c0_8 = arith.constant 0 : index
    %c0_9 = arith.constant 0 : index
    %10 = vector.load %arg4[%c0_8, %c0_9] : memref<16x32xf32, #tpu.memory_space<vmem>>, vector<16x32xf32>
    %11 = arith.truncf %10 : vector<16x32xf32> to vector<16x32xbf16>
    %c0_10 = arith.constant 0 : index
    %c0_11 = arith.constant 0 : index
    %12 = vector.load %arg7[%c0_10, %c0_11] : memref<32x32xbf16, #tpu.memory_space<vmem>>, vector<32x32xbf16>
    %cst_12 = arith.constant dense<0.000000e+00> : vector<16x32xf32>
    %13 = tpu.matmul %11, %12, %cst_12 {dimension_numbers = #tpu.dot_dimension_numbers<[1], [0], [0], [1], [0, 0, 1, 1], [], []>} : vector<16x32xbf16>, vector<32x32xbf16>, vector<16x32xf32> -> vector<16x32xf32>
    %14 = arith.truncf %13 : vector<16x32xf32> to vector<16x32xbf16>
    %c0_13 = arith.constant 0 : index
    %c0_14 = arith.constant 0 : index
    %15 = vector.load %arg9[%c0_13, %c0_14] : memref<1x32xf32, #tpu.memory_space<vmem>>, vector<1x32xf32>
    %16 = vector.extract_strided_slice %4 {offsets = [0, 0], sizes = [8, 32], strides = [1, 1]} : vector<16x32xbf16> to vector<8x32xbf16>
    %17 = vector.extract_strided_slice %9 {offsets = [0, 0], sizes = [8, 32], strides = [1, 1]} : vector<16x32xbf16> to vector<8x32xbf16>
    %18 = vector.extract_strided_slice %14 {offsets = [0, 0], sizes = [8, 32], strides = [1, 1]} : vector<16x32xbf16> to vector<8x32xbf16>
    %cst_15 = arith.constant 0.000000e+00 : f32
    %19 = vector.broadcast %cst_15 : f32 to vector<8x32xf32>
    %20 = vector.extract_strided_slice %16 {offsets = [0, 0], sizes = [8, 8], strides = [1, 1]} : vector<8x32xbf16> to vector<8x8xbf16>
    %21 = vector.extract_strided_slice %17 {offsets = [0, 0], sizes = [8, 8], strides = [1, 1]} : vector<8x32xbf16> to vector<8x8xbf16>
    %22 = vector.extract_strided_slice %18 {offsets = [0, 0], sizes = [8, 8], strides = [1, 1]} : vector<8x32xbf16> to vector<8x8xbf16>
    %cst_16 = arith.constant dense<0.000000e+00> : vector<8x8xf32>
    %23 = tpu.matmul %20, %21, %cst_16 {dimension_numbers = #tpu.dot_dimension_numbers<[1], [1], [0], [0], [0, 0, 1, 0], [], []>} : vector<8x8xbf16>, vector<8x8xbf16>, vector<8x8xf32> -> vector<8x8xf32>
    %cst_17 = arith.constant dense<0xFF800000> : vector<8xf32>
    %24 = vector.multi_reduction <maximumf>, %23, %cst_17 [1] : vector<8x8xf32> to vector<8xf32>
    %25 = vector.shape_cast %24 : vector<8xf32> to vector<8x1xf32>
    %26 = vector.broadcast %25 : vector<8x1xf32> to vector<8x8xf32>
    %27 = arith.subf %23, %26 : vector<8x8xf32>
    %28 = math.exp %27 : vector<8x8xf32>
    %cst_18 = arith.constant dense<0.000000e+00> : vector<8xf32>
    %29 = vector.multi_reduction <add>, %28, %cst_18 [1] : vector<8x8xf32> to vector<8xf32>
    %30 = vector.shape_cast %29 : vector<8xf32> to vector<8x1xf32>
    %31 = tpu.reciprocal %30 {approx = true} : vector<8x1xf32> -> vector<8x1xf32>
    %32 = arith.truncf %28 : vector<8x8xf32> to vector<8x8xbf16>
    %cst_19 = arith.constant dense<0.000000e+00> : vector<8x8xf32>
    %33 = tpu.matmul %32, %22, %cst_19 {dimension_numbers = #tpu.dot_dimension_numbers<[1], [0], [0], [1], [0, 0, 1, 1], [], []>} : vector<8x8xbf16>, vector<8x8xbf16>, vector<8x8xf32> -> vector<8x8xf32>
    %34 = vector.broadcast %31 : vector<8x1xf32> to vector<8x8xf32>
    %35 = arith.mulf %33, %34 : vector<8x8xf32>
    %36 = arith.truncf %35 : vector<8x8xf32> to vector<8x8xbf16>
    %c0_20 = arith.constant 0 : index
    %c0_21 = arith.constant 0 : index
    %37 = vector.load %arg8[%c0_20, %c0_21] : memref<32x32xbf16, #tpu.memory_space<vmem>>, vector<8x32xbf16>
    %cst_22 = arith.constant dense<0.000000e+00> : vector<8x32xf32>
    %38 = tpu.matmul %36, %37, %cst_22 {dimension_numbers = #tpu.dot_dimension_numbers<[1], [0], [0], [1], [0, 0, 1, 1], [], []>} : vector<8x8xbf16>, vector<8x32xbf16>, vector<8x32xf32> -> vector<8x32xf32>
    %39 = arith.addf %19, %38 : vector<8x32xf32>
    %40 = vector.extract_strided_slice %16 {offsets = [0, 8], sizes = [8, 8], strides = [1, 1]} : vector<8x32xbf16> to vector<8x8xbf16>
    %41 = vector.extract_strided_slice %17 {offsets = [0, 8], sizes = [8, 8], strides = [1, 1]} : vector<8x32xbf16> to vector<8x8xbf16>
    %42 = vector.extract_strided_slice %18 {offsets = [0, 8], sizes = [8, 8], strides = [1, 1]} : vector<8x32xbf16> to vector<8x8xbf16>
    %cst_23 = arith.constant dense<0.000000e+00> : vector<8x8xf32>
    %43 = tpu.matmul %40, %41, %cst_23 {dimension_numbers = #tpu.dot_dimension_numbers<[1], [1], [0], [0], [0, 0, 1, 0], [], []>} : vector<8x8xbf16>, vector<8x8xbf16>, vector<8x8xf32> -> vector<8x8xf32>
    %cst_24 = arith.constant dense<0xFF800000> : vector<8xf32>
    %44 = vector.multi_reduction <maximumf>, %43, %cst_24 [1] : vector<8x8xf32> to vector<8xf32>
    %45 = vector.shape_cast %44 : vector<8xf32> to vector<8x1xf32>
    %46 = vector.broadcast %45 : vector<8x1xf32> to vector<8x8xf32>
    %47 = arith.subf %43, %46 : vector<8x8xf32>
    %48 = math.exp %47 : vector<8x8xf32>
    %cst_25 = arith.constant dense<0.000000e+00> : vector<8xf32>
    %49 = vector.multi_reduction <add>, %48, %cst_25 [1] : vector<8x8xf32> to vector<8xf32>
    %50 = vector.shape_cast %49 : vector<8xf32> to vector<8x1xf32>
    %51 = tpu.reciprocal %50 {approx = true} : vector<8x1xf32> -> vector<8x1xf32>
    %52 = arith.truncf %48 : vector<8x8xf32> to vector<8x8xbf16>
    %cst_26 = arith.constant dense<0.000000e+00> : vector<8x8xf32>
    %53 = tpu.matmul %52, %42, %cst_26 {dimension_numbers = #tpu.dot_dimension_numbers<[1], [0], [0], [1], [0, 0, 1, 1], [], []>} : vector<8x8xbf16>, vector<8x8xbf16>, vector<8x8xf32> -> vector<8x8xf32>
    %54 = vector.broadcast %51 : vector<8x1xf32> to vector<8x8xf32>
    %55 = arith.mulf %53, %54 : vector<8x8xf32>
    %56 = arith.truncf %55 : vector<8x8xf32> to vector<8x8xbf16>
    %c8 = arith.constant 8 : index
    %c0_27 = arith.constant 0 : index
    %57 = vector.load %arg8[%c8, %c0_27] : memref<32x32xbf16, #tpu.memory_space<vmem>>, vector<8x32xbf16>
    %cst_28 = arith.constant dense<0.000000e+00> : vector<8x32xf32>
    %58 = tpu.matmul %56, %57, %cst_28 {dimension_numbers = #tpu.dot_dimension_numbers<[1], [0], [0], [1], [0, 0, 1, 1], [], []>} : vector<8x8xbf16>, vector<8x32xbf16>, vector<8x32xf32> -> vector<8x32xf32>
    %59 = arith.addf %39, %58 : vector<8x32xf32>
    %60 = vector.extract_strided_slice %16 {offsets = [0, 16], sizes = [8, 8], strides = [1, 1]} : vector<8x32xbf16> to vector<8x8xbf16>
    %61 = vector.extract_strided_slice %17 {offsets = [0, 16], sizes = [8, 8], strides = [1, 1]} : vector<8x32xbf16> to vector<8x8xbf16>
    %62 = vector.extract_strided_slice %18 {offsets = [0, 16], sizes = [8, 8], strides = [1, 1]} : vector<8x32xbf16> to vector<8x8xbf16>
    %cst_29 = arith.constant dense<0.000000e+00> : vector<8x8xf32>
    %63 = tpu.matmul %60, %61, %cst_29 {dimension_numbers = #tpu.dot_dimension_numbers<[1], [1], [0], [0], [0, 0, 1, 0], [], []>} : vector<8x8xbf16>, vector<8x8xbf16>, vector<8x8xf32> -> vector<8x8xf32>
    %cst_30 = arith.constant dense<0xFF800000> : vector<8xf32>
    %64 = vector.multi_reduction <maximumf>, %63, %cst_30 [1] : vector<8x8xf32> to vector<8xf32>
    %65 = vector.shape_cast %64 : vector<8xf32> to vector<8x1xf32>
    %66 = vector.broadcast %65 : vector<8x1xf32> to vector<8x8xf32>
    %67 = arith.subf %63, %66 : vector<8x8xf32>
    %68 = math.exp %67 : vector<8x8xf32>
    %cst_31 = arith.constant dense<0.000000e+00> : vector<8xf32>
    %69 = vector.multi_reduction <add>, %68, %cst_31 [1] : vector<8x8xf32> to vector<8xf32>
    %70 = vector.shape_cast %69 : vector<8xf32> to vector<8x1xf32>
    %71 = tpu.reciprocal %70 {approx = true} : vector<8x1xf32> -> vector<8x1xf32>
    %72 = arith.truncf %68 : vector<8x8xf32> to vector<8x8xbf16>
    %cst_32 = arith.constant dense<0.000000e+00> : vector<8x8xf32>
    %73 = tpu.matmul %72, %62, %cst_32 {dimension_numbers = #tpu.dot_dimension_numbers<[1], [0], [0], [1], [0, 0, 1, 1], [], []>} : vector<8x8xbf16>, vector<8x8xbf16>, vector<8x8xf32> -> vector<8x8xf32>
    %74 = vector.broadcast %71 : vector<8x1xf32> to vector<8x8xf32>
    %75 = arith.mulf %73, %74 : vector<8x8xf32>
    %76 = arith.truncf %75 : vector<8x8xf32> to vector<8x8xbf16>
    %c16 = arith.constant 16 : index
    %c0_33 = arith.constant 0 : index
    %77 = vector.load %arg8[%c16, %c0_33] : memref<32x32xbf16, #tpu.memory_space<vmem>>, vector<8x32xbf16>
    %cst_34 = arith.constant dense<0.000000e+00> : vector<8x32xf32>
    %78 = tpu.matmul %76, %77, %cst_34 {dimension_numbers = #tpu.dot_dimension_numbers<[1], [0], [0], [1], [0, 0, 1, 1], [], []>} : vector<8x8xbf16>, vector<8x32xbf16>, vector<8x32xf32> -> vector<8x32xf32>
    %79 = arith.addf %59, %78 : vector<8x32xf32>
    %80 = vector.extract_strided_slice %16 {offsets = [0, 24], sizes = [8, 8], strides = [1, 1]} : vector<8x32xbf16> to vector<8x8xbf16>
    %81 = vector.extract_strided_slice %17 {offsets = [0, 24], sizes = [8, 8], strides = [1, 1]} : vector<8x32xbf16> to vector<8x8xbf16>
    %82 = vector.extract_strided_slice %18 {offsets = [0, 24], sizes = [8, 8], strides = [1, 1]} : vector<8x32xbf16> to vector<8x8xbf16>
    %cst_35 = arith.constant dense<0.000000e+00> : vector<8x8xf32>
    %83 = tpu.matmul %80, %81, %cst_35 {dimension_numbers = #tpu.dot_dimension_numbers<[1], [1], [0], [0], [0, 0, 1, 0], [], []>} : vector<8x8xbf16>, vector<8x8xbf16>, vector<8x8xf32> -> vector<8x8xf32>
    %cst_36 = arith.constant dense<0xFF800000> : vector<8xf32>
    %84 = vector.multi_reduction <maximumf>, %83, %cst_36 [1] : vector<8x8xf32> to vector<8xf32>
    %85 = vector.shape_cast %84 : vector<8xf32> to vector<8x1xf32>
    %86 = vector.broadcast %85 : vector<8x1xf32> to vector<8x8xf32>
    %87 = arith.subf %83, %86 : vector<8x8xf32>
    %88 = math.exp %87 : vector<8x8xf32>
    %cst_37 = arith.constant dense<0.000000e+00> : vector<8xf32>
    %89 = vector.multi_reduction <add>, %88, %cst_37 [1] : vector<8x8xf32> to vector<8xf32>
    %90 = vector.shape_cast %89 : vector<8xf32> to vector<8x1xf32>
    %91 = tpu.reciprocal %90 {approx = true} : vector<8x1xf32> -> vector<8x1xf32>
    %92 = arith.truncf %88 : vector<8x8xf32> to vector<8x8xbf16>
    %cst_38 = arith.constant dense<0.000000e+00> : vector<8x8xf32>
    %93 = tpu.matmul %92, %82, %cst_38 {dimension_numbers = #tpu.dot_dimension_numbers<[1], [0], [0], [1], [0, 0, 1, 1], [], []>} : vector<8x8xbf16>, vector<8x8xbf16>, vector<8x8xf32> -> vector<8x8xf32>
    %94 = vector.broadcast %91 : vector<8x1xf32> to vector<8x8xf32>
    %95 = arith.mulf %93, %94 : vector<8x8xf32>
    %96 = arith.truncf %95 : vector<8x8xf32> to vector<8x8xbf16>
    %c24 = arith.constant 24 : index
    %c0_39 = arith.constant 0 : index
    %97 = vector.load %arg8[%c24, %c0_39] : memref<32x32xbf16, #tpu.memory_space<vmem>>, vector<8x32xbf16>
    %cst_40 = arith.constant dense<0.000000e+00> : vector<8x32xf32>
    %98 = tpu.matmul %96, %97, %cst_40 {dimension_numbers = #tpu.dot_dimension_numbers<[1], [0], [0], [1], [0, 0, 1, 1], [], []>} : vector<8x8xbf16>, vector<8x32xbf16>, vector<8x32xf32> -> vector<8x32xf32>
    %99 = arith.addf %79, %98 : vector<8x32xf32>
    %100 = vector.broadcast %15 : vector<1x32xf32> to vector<8x32xf32>
    %101 = arith.addf %99, %100 : vector<8x32xf32>
    %c0_41 = arith.constant 0 : index
    %c0_42 = arith.constant 0 : index
    %102 = vector.load %arg10[%c0_41, %c0_42] : memref<16x32xf32, #tpu.memory_space<vmem>>, vector<8x32xf32>
    tpu.vector_store %arg10[%c0_41, %c0_42], %101 {strides = array<i32>} : memref<16x32xf32, #tpu.memory_space<vmem>>, vector<8x32xf32>,
    %103 = vector.extract_strided_slice %4 {offsets = [8, 0], sizes = [8, 32], strides = [1, 1]} : vector<16x32xbf16> to vector<8x32xbf16>
    %104 = vector.extract_strided_slice %9 {offsets = [8, 0], sizes = [8, 32], strides = [1, 1]} : vector<16x32xbf16> to vector<8x32xbf16>
    %105 = vector.extract_strided_slice %14 {offsets = [8, 0], sizes = [8, 32], strides = [1, 1]} : vector<16x32xbf16> to vector<8x32xbf16>
    %cst_43 = arith.constant 0.000000e+00 : f32
    %106 = vector.broadcast %cst_43 : f32 to vector<8x32xf32>
    %107 = vector.extract_strided_slice %103 {offsets = [0, 0], sizes = [8, 8], strides = [1, 1]} : vector<8x32xbf16> to vector<8x8xbf16>
    %108 = vector.extract_strided_slice %104 {offsets = [0, 0], sizes = [8, 8], strides = [1, 1]} : vector<8x32xbf16> to vector<8x8xbf16>
    %109 = vector.extract_strided_slice %105 {offsets = [0, 0], sizes = [8, 8], strides = [1, 1]} : vector<8x32xbf16> to vector<8x8xbf16>
    %cst_44 = arith.constant dense<0.000000e+00> : vector<8x8xf32>
    %110 = tpu.matmul %107, %108, %cst_44 {dimension_numbers = #tpu.dot_dimension_numbers<[1], [1], [0], [0], [0, 0, 1, 0], [], []>} : vector<8x8xbf16>, vector<8x8xbf16>, vector<8x8xf32> -> vector<8x8xf32>
    %cst_45 = arith.constant dense<0xFF800000> : vector<8xf32>
    %111 = vector.multi_reduction <maximumf>, %110, %cst_45 [1] : vector<8x8xf32> to vector<8xf32>
    %112 = vector.shape_cast %111 : vector<8xf32> to vector<8x1xf32>
    %113 = vector.broadcast %112 : vector<8x1xf32> to vector<8x8xf32>
    %114 = arith.subf %110, %113 : vector<8x8xf32>
    %115 = math.exp %114 : vector<8x8xf32>
    %cst_46 = arith.constant dense<0.000000e+00> : vector<8xf32>
    %116 = vector.multi_reduction <add>, %115, %cst_46 [1] : vector<8x8xf32> to vector<8xf32>
    %117 = vector.shape_cast %116 : vector<8xf32> to vector<8x1xf32>
    %118 = tpu.reciprocal %117 {approx = true} : vector<8x1xf32> -> vector<8x1xf32>
    %119 = arith.truncf %115 : vector<8x8xf32> to vector<8x8xbf16>
    %cst_47 = arith.constant dense<0.000000e+00> : vector<8x8xf32>
    %120 = tpu.matmul %119, %109, %cst_47 {dimension_numbers = #tpu.dot_dimension_numbers<[1], [0], [0], [1], [0, 0, 1, 1], [], []>} : vector<8x8xbf16>, vector<8x8xbf16>, vector<8x8xf32> -> vector<8x8xf32>
    %121 = vector.broadcast %118 : vector<8x1xf32> to vector<8x8xf32>
    %122 = arith.mulf %120, %121 : vector<8x8xf32>
    %123 = arith.truncf %122 : vector<8x8xf32> to vector<8x8xbf16>
    %c0_48 = arith.constant 0 : index
    %c0_49 = arith.constant 0 : index
    %124 = vector.load %arg8[%c0_48, %c0_49] : memref<32x32xbf16, #tpu.memory_space<vmem>>, vector<8x32xbf16>
    %cst_50 = arith.constant dense<0.000000e+00> : vector<8x32xf32>
    %125 = tpu.matmul %123, %124, %cst_50 {dimension_numbers = #tpu.dot_dimension_numbers<[1], [0], [0], [1], [0, 0, 1, 1], [], []>} : vector<8x8xbf16>, vector<8x32xbf16>, vector<8x32xf32> -> vector<8x32xf32>
    %126 = arith.addf %106, %125 : vector<8x32xf32>
    %127 = vector.extract_strided_slice %103 {offsets = [0, 8], sizes = [8, 8], strides = [1, 1]} : vector<8x32xbf16> to vector<8x8xbf16>
    %128 = vector.extract_strided_slice %104 {offsets = [0, 8], sizes = [8, 8], strides = [1, 1]} : vector<8x32xbf16> to vector<8x8xbf16>
    %129 = vector.extract_strided_slice %105 {offsets = [0, 8], sizes = [8, 8], strides = [1, 1]} : vector<8x32xbf16> to vector<8x8xbf16>
    %cst_51 = arith.constant dense<0.000000e+00> : vector<8x8xf32>
    %130 = tpu.matmul %127, %128, %cst_51 {dimension_numbers = #tpu.dot_dimension_numbers<[1], [1], [0], [0], [0, 0, 1, 0], [], []>} : vector<8x8xbf16>, vector<8x8xbf16>, vector<8x8xf32> -> vector<8x8xf32>
    %cst_52 = arith.constant dense<0xFF800000> : vector<8xf32>
    %131 = vector.multi_reduction <maximumf>, %130, %cst_52 [1] : vector<8x8xf32> to vector<8xf32>
    %132 = vector.shape_cast %131 : vector<8xf32> to vector<8x1xf32>
    %133 = vector.broadcast %132 : vector<8x1xf32> to vector<8x8xf32>
    %134 = arith.subf %130, %133 : vector<8x8xf32>
    %135 = math.exp %134 : vector<8x8xf32>
    %cst_53 = arith.constant dense<0.000000e+00> : vector<8xf32>
    %136 = vector.multi_reduction <add>, %135, %cst_53 [1] : vector<8x8xf32> to vector<8xf32>
    %137 = vector.shape_cast %136 : vector<8xf32> to vector<8x1xf32>
    %138 = tpu.reciprocal %137 {approx = true} : vector<8x1xf32> -> vector<8x1xf32>
    %139 = arith.truncf %135 : vector<8x8xf32> to vector<8x8xbf16>
    %cst_54 = arith.constant dense<0.000000e+00> : vector<8x8xf32>
    %140 = tpu.matmul %139, %129, %cst_54 {dimension_numbers = #tpu.dot_dimension_numbers<[1], [0], [0], [1], [0, 0, 1, 1], [], []>} : vector<8x8xbf16>, vector<8x8xbf16>, vector<8x8xf32> -> vector<8x8xf32>
    %141 = vector.broadcast %138 : vector<8x1xf32> to vector<8x8xf32>
    %142 = arith.mulf %140, %141 : vector<8x8xf32>
    %143 = arith.truncf %142 : vector<8x8xf32> to vector<8x8xbf16>
    %c8_55 = arith.constant 8 : index
    %c0_56 = arith.constant 0 : index
    %144 = vector.load %arg8[%c8_55, %c0_56] : memref<32x32xbf16, #tpu.memory_space<vmem>>, vector<8x32xbf16>
    %cst_57 = arith.constant dense<0.000000e+00> : vector<8x32xf32>
    %145 = tpu.matmul %143, %144, %cst_57 {dimension_numbers = #tpu.dot_dimension_numbers<[1], [0], [0], [1], [0, 0, 1, 1], [], []>} : vector<8x8xbf16>, vector<8x32xbf16>, vector<8x32xf32> -> vector<8x32xf32>
    %146 = arith.addf %126, %145 : vector<8x32xf32>
    %147 = vector.extract_strided_slice %103 {offsets = [0, 16], sizes = [8, 8], strides = [1, 1]} : vector<8x32xbf16> to vector<8x8xbf16>
    %148 = vector.extract_strided_slice %104 {offsets = [0, 16], sizes = [8, 8], strides = [1, 1]} : vector<8x32xbf16> to vector<8x8xbf16>
    %149 = vector.extract_strided_slice %105 {offsets = [0, 16], sizes = [8, 8], strides = [1, 1]} : vector<8x32xbf16> to vector<8x8xbf16>
    %cst_58 = arith.constant dense<0.000000e+00> : vector<8x8xf32>
    %150 = tpu.matmul %147, %148, %cst_58 {dimension_numbers = #tpu.dot_dimension_numbers<[1], [1], [0], [0], [0, 0, 1, 0], [], []>} : vector<8x8xbf16>, vector<8x8xbf16>, vector<8x8xf32> -> vector<8x8xf32>
    %cst_59 = arith.constant dense<0xFF800000> : vector<8xf32>
    %151 = vector.multi_reduction <maximumf>, %150, %cst_59 [1] : vector<8x8xf32> to vector<8xf32>
    %152 = vector.shape_cast %151 : vector<8xf32> to vector<8x1xf32>
    %153 = vector.broadcast %152 : vector<8x1xf32> to vector<8x8xf32>
    %154 = arith.subf %150, %153 : vector<8x8xf32>
    %155 = math.exp %154 : vector<8x8xf32>
    %cst_60 = arith.constant dense<0.000000e+00> : vector<8xf32>
    %156 = vector.multi_reduction <add>, %155, %cst_60 [1] : vector<8x8xf32> to vector<8xf32>
    %157 = vector.shape_cast %156 : vector<8xf32> to vector<8x1xf32>
    %158 = tpu.reciprocal %157 {approx = true} : vector<8x1xf32> -> vector<8x1xf32>
    %159 = arith.truncf %155 : vector<8x8xf32> to vector<8x8xbf16>
    %cst_61 = arith.constant dense<0.000000e+00> : vector<8x8xf32>
    %160 = tpu.matmul %159, %149, %cst_61 {dimension_numbers = #tpu.dot_dimension_numbers<[1], [0], [0], [1], [0, 0, 1, 1], [], []>} : vector<8x8xbf16>, vector<8x8xbf16>, vector<8x8xf32> -> vector<8x8xf32>
    %161 = vector.broadcast %158 : vector<8x1xf32> to vector<8x8xf32>
    %162 = arith.mulf %160, %161 : vector<8x8xf32>
    %163 = arith.truncf %162 : vector<8x8xf32> to vector<8x8xbf16>
    %c16_62 = arith.constant 16 : index
    %c0_63 = arith.constant 0 : index
    %164 = vector.load %arg8[%c16_62, %c0_63] : memref<32x32xbf16, #tpu.memory_space<vmem>>, vector<8x32xbf16>
    %cst_64 = arith.constant dense<0.000000e+00> : vector<8x32xf32>
    %165 = tpu.matmul %163, %164, %cst_64 {dimension_numbers = #tpu.dot_dimension_numbers<[1], [0], [0], [1], [0, 0, 1, 1], [], []>} : vector<8x8xbf16>, vector<8x32xbf16>, vector<8x32xf32> -> vector<8x32xf32>
    %166 = arith.addf %146, %165 : vector<8x32xf32>
    %167 = vector.extract_strided_slice %103 {offsets = [0, 24], sizes = [8, 8], strides = [1, 1]} : vector<8x32xbf16> to vector<8x8xbf16>
    %168 = vector.extract_strided_slice %104 {offsets = [0, 24], sizes = [8, 8], strides = [1, 1]} : vector<8x32xbf16> to vector<8x8xbf16>
    %169 = vector.extract_strided_slice %105 {offsets = [0, 24], sizes = [8, 8], strides = [1, 1]} : vector<8x32xbf16> to vector<8x8xbf16>
    %cst_65 = arith.constant dense<0.000000e+00> : vector<8x8xf32>
    %170 = tpu.matmul %167, %168, %cst_65 {dimension_numbers = #tpu.dot_dimension_numbers<[1], [1], [0], [0], [0, 0, 1, 0], [], []>} : vector<8x8xbf16>, vector<8x8xbf16>, vector<8x8xf32> -> vector<8x8xf32>
    %cst_66 = arith.constant dense<0xFF800000> : vector<8xf32>
    %171 = vector.multi_reduction <maximumf>, %170, %cst_66 [1] : vector<8x8xf32> to vector<8xf32>
    %172 = vector.shape_cast %171 : vector<8xf32> to vector<8x1xf32>
    %173 = vector.broadcast %172 : vector<8x1xf32> to vector<8x8xf32>
    %174 = arith.subf %170, %173 : vector<8x8xf32>
    %175 = math.exp %174 : vector<8x8xf32>
    %cst_67 = arith.constant dense<0.000000e+00> : vector<8xf32>
    %176 = vector.multi_reduction <add>, %175, %cst_67 [1] : vector<8x8xf32> to vector<8xf32>
    %177 = vector.shape_cast %176 : vector<8xf32> to vector<8x1xf32>
    %178 = tpu.reciprocal %177 {approx = true} : vector<8x1xf32> -> vector<8x1xf32>
    %179 = arith.truncf %175 : vector<8x8xf32> to vector<8x8xbf16>
    %cst_68 = arith.constant dense<0.000000e+00> : vector<8x8xf32>
    %180 = tpu.matmul %179, %169, %cst_68 {dimension_numbers = #tpu.dot_dimension_numbers<[1], [0], [0], [1], [0, 0, 1, 1], [], []>} : vector<8x8xbf16>, vector<8x8xbf16>, vector<8x8xf32> -> vector<8x8xf32>
    %181 = vector.broadcast %178 : vector<8x1xf32> to vector<8x8xf32>
    %182 = arith.mulf %180, %181 : vector<8x8xf32>
    %183 = arith.truncf %182 : vector<8x8xf32> to vector<8x8xbf16>
    %c24_69 = arith.constant 24 : index
    %c0_70 = arith.constant 0 : index
    %184 = vector.load %arg8[%c24_69, %c0_70] : memref<32x32xbf16, #tpu.memory_space<vmem>>, vector<8x32xbf16>
    %cst_71 = arith.constant dense<0.000000e+00> : vector<8x32xf32>
    %185 = tpu.matmul %183, %184, %cst_71 {dimension_numbers = #tpu.dot_dimension_numbers<[1], [0], [0], [1], [0, 0, 1, 1], [], []>} : vector<8x8xbf16>, vector<8x32xbf16>, vector<8x32xf32> -> vector<8x32xf32>
    %186 = arith.addf %166, %185 : vector<8x32xf32>
    %187 = vector.broadcast %15 : vector<1x32xf32> to vector<8x32xf32>
    %188 = arith.addf %186, %187 : vector<8x32xf32>
    %c8_72 = arith.constant 8 : index
    %c0_73 = arith.constant 0 : index
    %189 = vector.load %arg10[%c8_72, %c0_73] : memref<16x32xf32, #tpu.memory_space<vmem>>, vector<8x32xf32>
    tpu.vector_store %arg10[%c8_72, %c0_73], %188 {strides = array<i32>} : memref<16x32xf32, #tpu.memory_space<vmem>>, vector<8x32xf32>,
    return
  }
  func.func @transform_0(%arg0: i32, %arg1: i32) -> (i32, i32) {
    %c1_i32 = arith.constant 1 : i32
    %0 = arith.muli %arg0, %c1_i32 : i32
    %1 = arith.addi %0, %arg1 : i32
    %c0_i32 = arith.constant 0 : i32
    %c0_i32_0 = arith.constant 0 : i32
    return %1, %c0_i32 : i32, i32
  }
  func.func @transform_1(%arg0: i32, %arg1: i32) -> (i32, i32) {
    %c0_i32 = arith.constant 0 : i32
    %c0_i32_0 = arith.constant 0 : i32
    return %arg0, %c0_i32 : i32, i32
  }
  func.func @transform_2(%arg0: i32, %arg1: i32) -> (i32, i32) {
    %c0_i32 = arith.constant 0 : i32
    %c0_i32_0 = arith.constant 0 : i32
    return %arg0, %c0_i32 : i32, i32
  }
  func.func @transform_3(%arg0: i32, %arg1: i32) -> (i32, i32) {
    %c0_i32 = arith.constant 0 : i32
    %c0_i32_0 = arith.constant 0 : i32
    %c0_i32_1 = arith.constant 0 : i32
    return %c0_i32, %c0_i32_0 : i32, i32
  }
  func.func @transform_4(%arg0: i32, %arg1: i32) -> (i32, i32) {
    %c0_i32 = arith.constant 0 : i32
    %c0_i32_0 = arith.constant 0 : i32
    %c0_i32_1 = arith.constant 0 : i32
    return %c0_i32, %c0_i32_0 : i32, i32
  }
  func.func @transform_5(%arg0: i32, %arg1: i32) -> (i32, i32) {
    %c0_i32 = arith.constant 0 : i32
    %c0_i32_0 = arith.constant 0 : i32
    %c0_i32_1 = arith.constant 0 : i32
    return %c0_i32, %c0_i32_0 : i32, i32
  }
  func.func @transform_6(%arg0: i32, %arg1: i32) -> (i32, i32) {
    %c0_i32 = arith.constant 0 : i32
    %c0_i32_0 = arith.constant 0 : i32
    %c0_i32_1 = arith.constant 0 : i32
    return %c0_i32, %c0_i32_0 : i32, i32
  }
  func.func @transform_7(%arg0: i32, %arg1: i32) -> (i32, i32) {
    %c0_i32 = arith.constant 0 : i32
    %c0_i32_0 = arith.constant 0 : i32
    %c0_i32_1 = arith.constant 0 : i32
    return %c0_i32, %c0_i32_0 : i32, i32
  }
  func.func @transform_8(%arg0: i32, %arg1: i32) -> (i32, i32) {
    %c1_i32 = arith.constant 1 : i32
    %0 = arith.muli %arg0, %c1_i32 : i32
    %1 = arith.addi %0, %arg1 : i32
    %c0_i32 = arith.constant 0 : i32
    %c0_i32_0 = arith.constant 0 : i32
    return %1, %c0_i32 : i32, i32
  }
}

</mosaic_0001>

<llo_original>
// kernel: tpu_custom_call.1
$region0: #{tpu_custom_call.1}
  #allocation0 [shape = 'u32[]', space=smem, size = 0x4, offset = 0x4, fixed_abs, tag = 'smem constant byte address 0x4 - core index']
  #allocation1 [shape = 'u32[72,128]{1,0:T(1,128)}', space=vmem, size = 0x9000, scoped, tag = 'internal scratch']
  %s0 = inlined_call_operand.hbm [shape: f32[16,32], index: 0, kind: input, shape index: {}]
  %s1 = inlined_call_operand.hbm [shape: f32[16,32], index: 1, kind: input, shape index: {}]
  %s2 = inlined_call_operand.hbm [shape: f32[16,32], index: 2, kind: input, shape index: {}]
  %s3 = inlined_call_operand.hbm [shape: bf16[32,32], index: 3, kind: input, shape index: {}]
  %s4 = inlined_call_operand.hbm [shape: bf16[32,32], index: 4, kind: input, shape index: {}]
  %s5 = inlined_call_operand.hbm [shape: bf16[32,32], index: 5, kind: input, shape index: {}]
  %s6 = inlined_call_operand.hbm [shape: bf16[32,32], index: 6, kind: input, shape index: {}]
  %s7 = inlined_call_operand.vmem [shape: f32[1,32], index: 7, kind: input, shape index: {}]
  %s8 = inlined_call_operand.hbm [shape: f32[16,32], index: 8, kind: output, shape index: {}]
  %s9 = sld [smem:[#allocation0]]
  $region70: #{tpu_custom_call.1} parent=0
    _
  %s11 = ssub.s32 1, %s9
  %s12 = scalar_select 0, %s11, %s9
  $region1: #{tpu_custom_call.1} parent=0
    #allocation2 [shape = 'u8[8192]{0}', space=vmem, size = 0x2000, scoped, tag = 'input window, operand 0, single buffered']
    #allocation3 [shape = 's32[1]{0}', space=sflag, size = 0x4, scoped, tag = 'scoped memory for tpu_custom_call.1']
    #allocation4 [shape = 's32[1]{0}', space=sflag, size = 0x4, scoped, tag = 'scoped memory for tpu_custom_call.1']
    #allocation5 [shape = 'u8[8192]{0}', space=vmem, size = 0x2000, scoped, tag = 'input window, operand 1, single buffered']
    #allocation6 [shape = 's32[1]{0}', space=sflag, size = 0x4, scoped, tag = 'scoped memory for tpu_custom_call.1']
    #allocation7 [shape = 'u8[8192]{0}', space=vmem, size = 0x2000, scoped, tag = 'input window, operand 2, single buffered']
    #allocation8 [shape = 'u8[8192]{0}', space=vmem, size = 0x2000, scoped, tag = 'input window, operand 3, single buffered']
    #allocation9 [shape = 's32[1]{0}', space=sflag, size = 0x4, scoped, tag = 'scoped memory for tpu_custom_call.1']
    #allocation10 [shape = 'u8[8192]{0}', space=vmem, size = 0x2000, scoped, tag = 'input window, operand 4, single buffered']
    #allocation11 [shape = 'u8[8192]{0}', space=vmem, size = 0x2000, scoped, tag = 'input window, operand 5, single buffered']
    #allocation12 [shape = 's32[1]{0}', space=sflag, size = 0x4, scoped, tag = 'scoped memory for tpu_custom_call.1']
    #allocation13 [shape = 'u8[8192]{0}', space=vmem, size = 0x2000, scoped, tag = 'input window, operand 6, single buffered']
    #allocation14 [shape = 'u8[8192]{0}', space=vmem, size = 0x2000, scoped, tag = 'output window, operand 0, single buffered']
    %13 = vsyncpa [#allocation3], 0
    %14 = vsyncpa [#allocation6], 0
    %15 = vsyncpa [#allocation9], 0
    %16 = vsyncpa [#allocation12], 0
    %17 = vsyncpa [#allocation4], 0
    // Predicated region
    $region2: #{tpu_custom_call.1} parent=1 // pred_check
      _
    $region3: #{tpu_custom_call.1} parent=1 // pred_check_branch
      %19 = sbr.rel (0) target = $region5
    $region4: #{tpu_custom_call.1} parent=1 // pred_region
      %s20 = sadd.s32 0, 0
      %s21 = smul.u32 2, %s20
      %23 = vsyncadd [#allocation3], 0
      %s24 = smul.addr %s21, 8
      %s25 = scalar_lea.hbm %s0, %s24
      %s26 = sshll.u32 %s25, 4
      %s27 = int_to_ptr.hbm [resolvable:$true] %s26
      %s28 = sshll.u32 [#allocation2], 4
      %s29 = int_to_ptr.vmem [resolvable:$true] %s28
      %34 = dma.hbm_to_vmem [thread:$0]  %s27, 256, %s29, [#allocation3], 128, 128, 8
    $region5: #{tpu_custom_call.1} parent=1 // pred_fallthru
      _
    // Predicated region
    $region6: #{tpu_custom_call.1} parent=1 // pred_check
      _
    $region7: #{tpu_custom_call.1} parent=1 // pred_check_branch
      %36 = sbr.rel (0) target = $region9
    $region8: #{tpu_custom_call.1} parent=1 // pred_region
      %38 = vsyncadd [#allocation6], 0
      %s39 = sshll.u32 %s1, 4
      %s40 = int_to_ptr.hbm [resolvable:$true] %s39
      %s41 = sshll.u32 [#allocation5], 4
      %s42 = int_to_ptr.vmem [resolvable:$true] %s41
      %47 = dma.hbm_to_vmem [thread:$0]  %s40, 256, %s42, [#allocation6], 128, 128, 8
    $region9: #{tpu_custom_call.1} parent=1 // pred_fallthru
      _
    // Predicated region
    $region10: #{tpu_custom_call.1} parent=1 // pred_check
      _
    $region11: #{tpu_custom_call.1} parent=1 // pred_check_branch
      %49 = sbr.rel (0) target = $region13
    $region12: #{tpu_custom_call.1} parent=1 // pred_region
      %51 = vsyncadd [#allocation6], 0
      %s52 = sshll.u32 %s2, 4
      %s53 = int_to_ptr.hbm [resolvable:$true] %s52
      %s54 = sshll.u32 [#allocation7], 4
      %s55 = int_to_ptr.vmem [resolvable:$true] %s54
      %60 = dma.hbm_to_vmem [thread:$0]  %s53, 256, %s55, [#allocation6], 128, 128, 8
    $region13: #{tpu_custom_call.1} parent=1 // pred_fallthru
      _
    // Predicated region
    $region14: #{tpu_custom_call.1} parent=1 // pred_check
      _
    $region15: #{tpu_custom_call.1} parent=1 // pred_check_branch
      %62 = sbr.rel (0) target = $region17
    $region16: #{tpu_custom_call.1} parent=1 // pred_region
      %64 = vsyncadd [#allocation9], 0
      %s65 = sshll.u32 %s3, 4
      %s66 = int_to_ptr.hbm [resolvable:$true] %s65
      %s67 = sshll.u32 [#allocation8], 4
      %s68 = int_to_ptr.vmem [resolvable:$true] %s67
      %73 = dma.hbm_to_vmem [thread:$0]  %s66, 256, %s68, [#allocation9], 64, 64, 4
    $region17: #{tpu_custom_call.1} parent=1 // pred_fallthru
      _
    // Predicated region
    $region18: #{tpu_custom_call.1} parent=1 // pred_check
      _
    $region19: #{tpu_custom_call.1} parent=1 // pred_check_branch
      %75 = sbr.rel (0) target = $region21
    $region20: #{tpu_custom_call.1} parent=1 // pred_region
      %77 = vsyncadd [#allocation9], 0
      %s78 = sshll.u32 %s4, 4
      %s79 = int_to_ptr.hbm [resolvable:$true] %s78
      %s80 = sshll.u32 [#allocation10], 4
      %s81 = int_to_ptr.vmem [resolvable:$true] %s80
      %86 = dma.hbm_to_vmem [thread:$0]  %s79, 256, %s81, [#allocation9], 64, 64, 4
    $region21: #{tpu_custom_call.1} parent=1 // pred_fallthru
      _
    // Predicated region
    $region22: #{tpu_custom_call.1} parent=1 // pred_check
      _
    $region23: #{tpu_custom_call.1} parent=1 // pred_check_branch
      %88 = sbr.rel (0) target = $region25
    $region24: #{tpu_custom_call.1} parent=1 // pred_region
      %90 = vsyncadd [#allocation12], 0
      %s91 = sshll.u32 %s5, 4
      %s92 = int_to_ptr.hbm [resolvable:$true] %s91
      %s93 = sshll.u32 [#allocation11], 4
      %s94 = int_to_ptr.vmem [resolvable:$true] %s93
      %99 = dma.hbm_to_vmem [thread:$0]  %s92, 256, %s94, [#allocation12], 64, 64, 4
    $region25: #{tpu_custom_call.1} parent=1 // pred_fallthru
      _
    // Predicated region
    $region26: #{tpu_custom_call.1} parent=1 // pred_check
      _
    $region27: #{tpu_custom_call.1} parent=1 // pred_check_branch
      %101 = sbr.rel (0) target = $region29
    $region28: #{tpu_custom_call.1} parent=1 // pred_region
      %103 = vsyncadd [#allocation12], 0
      %s104 = sshll.u32 %s6, 4
      %s105 = int_to_ptr.hbm [resolvable:$true] %s104
      %s106 = sshll.u32 [#allocation13], 4
      %s107 = int_to_ptr.vmem [resolvable:$true] %s106
      %112 = dma.hbm_to_vmem [thread:$0]  %s105, 256, %s107, [#allocation12], 64, 64, 4
    $region29: #{tpu_custom_call.1} parent=1 // pred_fallthru
      _
    // Predicated region
    $region30: #{tpu_custom_call.1} parent=1 // pred_check
      _
    $region31: #{tpu_custom_call.1} parent=1 // pred_check_branch
      %114 = sbr.rel (0) target = $region33
    $region32: #{tpu_custom_call.1} parent=1 // pred_region
      _
    $region33: #{tpu_custom_call.1} parent=1 // pred_fallthru
      _
    // Predicated region
    $region34: #{tpu_custom_call.1} parent=1 // pred_check
      _
    $region35: #{tpu_custom_call.1} parent=1 // pred_check_branch
      %116 = sbr.rel (0) target = $region37
    $region36: #{tpu_custom_call.1} parent=1 // pred_region
      %118 = dma.done [#allocation3], 256
    $region37: #{tpu_custom_call.1} parent=1 // pred_fallthru
      _
    // Predicated region
    $region38: #{tpu_custom_call.1} parent=1 // pred_check
      _
    $region39: #{tpu_custom_call.1} parent=1 // pred_check_branch
      %120 = sbr.rel (0) target = $region41
    $region40: #{tpu_custom_call.1} parent=1 // pred_region
      %122 = dma.done [#allocation6], 256
    $region41: #{tpu_custom_call.1} parent=1 // pred_fallthru
      _
    // Predicated region
    $region42: #{tpu_custom_call.1} parent=1 // pred_check
      _
    $region43: #{tpu_custom_call.1} parent=1 // pred_check_branch
      %124 = sbr.rel (0) target = $region45
    $region44: #{tpu_custom_call.1} parent=1 // pred_region
      %126 = dma.done [#allocation6], 256
    $region45: #{tpu_custom_call.1} parent=1 // pred_fallthru
      _
    // Predicated region
    $region46: #{tpu_custom_call.1} parent=1 // pred_check
      _
    $region47: #{tpu_custom_call.1} parent=1 // pred_check_branch
      %128 = sbr.rel (0) target = $region49
    $region48: #{tpu_custom_call.1} parent=1 // pred_region
      %130 = dma.done [#allocation9], 256
    $region49: #{tpu_custom_call.1} parent=1 // pred_fallthru
      _
    // Predicated region
    $region50: #{tpu_custom_call.1} parent=1 // pred_check
      _
    $region51: #{tpu_custom_call.1} parent=1 // pred_check_branch
      %132 = sbr.rel (0) target = $region53
    $region52: #{tpu_custom_call.1} parent=1 // pred_region
      %134 = dma.done [#allocation9], 256
    $region53: #{tpu_custom_call.1} parent=1 // pred_fallthru
      _
    // Predicated region
    $region54: #{tpu_custom_call.1} parent=1 // pred_check
      _
    $region55: #{tpu_custom_call.1} parent=1 // pred_check_branch
      %136 = sbr.rel (0) target = $region57
    $region56: #{tpu_custom_call.1} parent=1 // pred_region
      %138 = dma.done [#allocation12], 256
    $region57: #{tpu_custom_call.1} parent=1 // pred_fallthru
      _
    // Predicated region
    $region58: #{tpu_custom_call.1} parent=1 // pred_check
      _
    $region59: #{tpu_custom_call.1} parent=1 // pred_check_branch
      %140 = sbr.rel (0) target = $region61
    $region60: #{tpu_custom_call.1} parent=1 // pred_region
      %142 = dma.done [#allocation12], 256
    $region61: #{tpu_custom_call.1} parent=1 // pred_fallthru
      _
    %s143 = sadd.s32 0, 0
    %s144 = smul.u32 2, %s143
    %s145 = sadd.s32 0, 0
    %s146 = smul.u32 2, %s145
    %v148 = vld [vmem:[#allocation2] sm:$0xff]
    %v149 = vld [vmem:[#allocation2 + $0x8] sm:$0xff]
    %v150 = vpack.c.bf16 %v149, %v148
    %v151 = vld [vmem:[#allocation8] sm:$0xf]
    %v152 = vld [vmem:[#allocation8 + $0x4] sm:$0xf]
    %v153 = vld [vmem:[#allocation8 + $0x8] sm:$0xf]
    %v154 = vld [vmem:[#allocation8 + $0xc] sm:$0xf]
    %v159 = vunpack.c.l.b16 %v151
    %v160 = vunpack.c.l.b16 %v152
    %v161 = vunpack.c.l.b16 %v153
    %v162 = vunpack.c.l.b16 %v154
    %v163 = vpack.c.b16 %v160, %v159
    %v164 = vpack.c.b16 %v162, %v161
    %vm167 = vcmask 261120
    %v169 = vsel %vm167, %v150, 0
    %171 = vmatpush.bf16.msra.mxu0 0
    %172 = vmatpush.bf16.msra.mxu0 0
    %173 = vmatpush.bf16.msra.mxu0 0
    %174 = vmatpush.bf16.msra.mxu0 0
    %175 = vmatpush.bf16.msra.mxu0 0
    %176 = vmatpush.bf16.msra.mxu0 0
    %177 = vmatpush.bf16.msra.mxu0 %v164
    %178 = vmatpush.bf16.msra.mxu0 %v163
    %179 = vmatmul.bf16.gmra.mxu0 %v169
    %v180 = vpop.f32.mrf.mxu0
    %v181 = vadd.f32 0.0, %v180
    %v182 = vpop.f32.mrf.mxu0
    %v183 = vadd.f32 0.0, %v182
    %184 = vdwg.mxu0
    %v185 = vpack.c.bf16 %v181, %v181
    %v186 = vpack.c.bf16 %v183, %v183
    %v187 = vld [vmem:[#allocation5] sm:$0xff]
    %v188 = vld [vmem:[#allocation5 + $0x8] sm:$0xff]
    %v189 = vpack.c.bf16 %v188, %v187
    %v190 = vld [vmem:[#allocation10] sm:$0xf]
    %v191 = vld [vmem:[#allocation10 + $0x4] sm:$0xf]
    %v192 = vld [vmem:[#allocation10 + $0x8] sm:$0xf]
    %v193 = vld [vmem:[#allocation10 + $0xc] sm:$0xf]
    %v198 = vunpack.c.l.b16 %v190
    %v199 = vunpack.c.l.b16 %v191
    %v200 = vunpack.c.l.b16 %v192
    %v201 = vunpack.c.l.b16 %v193
    %v202 = vpack.c.b16 %v199, %v198
    %v203 = vpack.c.b16 %v201, %v200
    %v207 = vsel %vm167, %v189, 0
    %209 = vmatpush.bf16.msra.mxu0 0
    %210 = vmatpush.bf16.msra.mxu0 0
    %211 = vmatpush.bf16.msra.mxu0 0
    %212 = vmatpush.bf16.msra.mxu0 0
    %213 = vmatpush.bf16.msra.mxu0 0
    %214 = vmatpush.bf16.msra.mxu0 0
    %215 = vmatpush.bf16.msra.mxu0 %v203
    %216 = vmatpush.bf16.msra.mxu0 %v202
    %217 = vmatmul.bf16.gmra.mxu0 %v207
    %v218 = vpop.f32.mrf.mxu0
    %v219 = vadd.f32 0.0, %v218
    %v220 = vpop.f32.mrf.mxu0
    %v221 = vadd.f32 0.0, %v220
    %222 = vdwg.mxu0
    %v223 = vpack.c.bf16 %v219, %v219
    %v224 = vpack.c.bf16 %v221, %v221
    %v225 = vld [vmem:[#allocation7] sm:$0xff]
    %v226 = vld [vmem:[#allocation7 + $0x8] sm:$0xff]
    %v227 = vpack.c.bf16 %v226, %v225
    %v228 = vld [vmem:[#allocation11] sm:$0xf]
    %v229 = vld [vmem:[#allocation11 + $0x4] sm:$0xf]
    %v230 = vld [vmem:[#allocation11 + $0x8] sm:$0xf]
    %v231 = vld [vmem:[#allocation11 + $0xc] sm:$0xf]
    %v236 = vunpack.c.l.b16 %v228
    %v237 = vunpack.c.l.b16 %v229
    %v238 = vunpack.c.l.b16 %v230
    %v239 = vunpack.c.l.b16 %v231
    %v240 = vpack.c.b16 %v237, %v236
    %v241 = vpack.c.b16 %v239, %v238
    %v245 = vsel %vm167, %v227, 0
    %247 = vmatpush.bf16.msra.mxu0 0
    %248 = vmatpush.bf16.msra.mxu0 0
    %249 = vmatpush.bf16.msra.mxu0 0
    %250 = vmatpush.bf16.msra.mxu0 0
    %251 = vmatpush.bf16.msra.mxu0 0
    %252 = vmatpush.bf16.msra.mxu0 0
    %253 = vmatpush.bf16.msra.mxu0 %v241
    %254 = vmatpush.bf16.msra.mxu0 %v240
    %255 = vmatmul.bf16.gmra.mxu0 %v245
    %v256 = vpop.f32.mrf.mxu0
    %v257 = vadd.f32 0.0, %v256
    %v258 = vpop.f32.mrf.mxu0
    %v259 = vadd.f32 0.0, %v258
    %260 = vdwg.mxu0
    %v261 = vpack.c.bf16 %v257, %v257
    %v262 = vpack.c.bf16 %v259, %v259
    %v263 = vld [vmem:[%s7] sm:$0x1]
    %vm264 = vcmask 64512
    %v266 = vsel %vm264, %v185, 0
    %v269 = vsel %vm264, %v223, 0
    %271 = vmatpush.bf16.xpose.msra.mxu0 0
    %272 = vmatpush.bf16.xpose.msra.mxu0 0
    %273 = vmatpush.bf16.xpose.msra.mxu0 0
    %274 = vmatpush.bf16.xpose.msra.mxu0 0
    %275 = vmatpush.bf16.xpose.msra.mxu0 0
    %276 = vmatpush.bf16.xpose.msra.mxu0 0
    %277 = vmatpush.bf16.xpose.msra.mxu0 0
    %278 = vmatpush.bf16.xpose.msra.mxu0 %v269
    %279 = vmatmul.bf16.gmra.mxu0 %v266
    %v280 = vpop.f32.mrf.mxu0
    %v281 = vadd.f32 0.0, %v280
    %v282 = vpop.f32.mrf.mxu0
    %283 = vdwg.mxu0
    %v284 = vsel %vm264, %v281, -inf
    %285 = vmax.xlane.f32.xlu0 %v284
    %v286 = vpop.xlane.xlu0 %285
    %v287 = vsub.f32 %v281, %v286
    %v288 = vmul.f32 %v287, 1.442695
    %v289 = vpow.pop %v288
    %v290 = vsel %vm264, %v289, 0.0
    %291 = vadd.xlane.f32.xlu0 %v290
    %v292 = vpop.xlane.xlu0 %291
    %v293 = vrcp.pop %v292
    %v294 = vpack.c.bf16 %v289, %v289
    %v296 = vsel %vm264, %v294, 0
    %vm298 = vcmask 1043456
    %v300 = vsel %vm298, %v261, 0
    %302 = vmatpush.bf16.msra.mxu0 0
    %303 = vmatpush.bf16.msra.mxu0 0
    %304 = vmatpush.bf16.msra.mxu0 0
    %305 = vmatpush.bf16.msra.mxu0 0
    %306 = vmatpush.bf16.msra.mxu0 0
    %307 = vmatpush.bf16.msra.mxu0 0
    %308 = vmatpush.bf16.msra.mxu0 0
    %309 = vmatpush.bf16.msra.mxu0 %v300
    %310 = vmatmul.bf16.gmra.mxu0 %v296
    %v311 = vpop.f32.mrf.mxu0
    %v312 = vadd.f32 0.0, %v311
    %v313 = vpop.f32.mrf.mxu0
    %314 = vdwg.mxu0
    %v315 = vmul.f32 %v312, %v293
    %v316 = vpack.c.bf16 %v315, %v315
    %v317 = vld [vmem:[#allocation13] sm:$0xf]
    %v319 = vunpack.c.l.b16 %v185
    %v320 = vpack.c.b16 %v319, %v319
    %321 = vrot.lane.b32.xlu0 %v320, 120
    %v322 = vpop.permute.xlu0 %321
    %v324 = vunpack.c.l.b16 %v223
    %v325 = vpack.c.b16 %v324, %v324
    %326 = vrot.lane.b32.xlu0 %v325, 120
    %v327 = vpop.permute.xlu0 %326
    %v329 = vsel %vm264, %v322, 0
    %v332 = vsel %vm264, %v327, 0
    %334 = vmatpush.bf16.xpose.msra.mxu0 0
    %335 = vmatpush.bf16.xpose.msra.mxu0 0
    %336 = vmatpush.bf16.xpose.msra.mxu0 0
    %337 = vmatpush.bf16.xpose.msra.mxu0 0
    %338 = vmatpush.bf16.xpose.msra.mxu0 0
    %339 = vmatpush.bf16.xpose.msra.mxu0 0
    %340 = vmatpush.bf16.xpose.msra.mxu0 0
    %341 = vmatpush.bf16.xpose.msra.mxu0 %v332
    %342 = vmatmul.bf16.gmra.mxu0 %v329
    %v343 = vpop.f32.mrf.mxu0
    %v344 = vadd.f32 0.0, %v343
    %v345 = vpop.f32.mrf.mxu0
    %346 = vdwg.mxu0
    %v347 = vsel %vm264, %v344, -inf
    %348 = vmax.xlane.f32.xlu0 %v347
    %v349 = vpop.xlane.xlu0 %348
    %v350 = vsub.f32 %v344, %v349
    %v351 = vmul.f32 %v350, 1.442695
    %v352 = vpow.pop %v351
    %v353 = vsel %vm264, %v352, 0.0
    %354 = vadd.xlane.f32.xlu0 %v353
    %v355 = vpop.xlane.xlu0 %354
    %v356 = vrcp.pop %v355
    %v357 = vpack.c.bf16 %v352, %v352
    %v359 = vunpack.c.l.b16 %v261
    %v360 = vpack.c.b16 %v359, %v359
    %361 = vrot.lane.b32.xlu0 %v360, 120
    %v362 = vpop.permute.xlu0 %361
    %v364 = vsel %vm264, %v357, 0
    %v367 = vsel %vm298, %v362, 0
    %369 = vmatpush.bf16.msra.mxu0 0
    %370 = vmatpush.bf16.msra.mxu0 0
    %371 = vmatpush.bf16.msra.mxu0 0
    %372 = vmatpush.bf16.msra.mxu0 0
    %373 = vmatpush.bf16.msra.mxu0 0
    %374 = vmatpush.bf16.msra.mxu0 0
    %375 = vmatpush.bf16.msra.mxu0 0
    %376 = vmatpush.bf16.msra.mxu0 %v367
    %377 = vmatmul.bf16.gmra.mxu0 %v364
    %v378 = vpop.f32.mrf.mxu0
    %v379 = vadd.f32 0.0, %v378
    %v380 = vpop.f32.mrf.mxu0
    %381 = vdwg.mxu0
    %v382 = vmul.f32 %v379, %v356
    %v383 = vpack.c.bf16 %v382, %v382
    %v384 = vld [vmem:[#allocation13 + $0x4] sm:$0xf]
    %v386 = vsel %vm264, %v383, 0
    %v389 = vsel %vm298, %v384, 0
    %391 = vmatpush.bf16.msra.mxu0 0
    %392 = vmatpush.bf16.msra.mxu0 0
    %393 = vmatpush.bf16.msra.mxu0 0
    %394 = vmatpush.bf16.msra.mxu0 0
    %395 = vmatpush.bf16.msra.mxu0 0
    %396 = vmatpush.bf16.msra.mxu0 0
    %397 = vmatpush.bf16.msra.mxu0 0
    %398 = vmatpush.bf16.msra.mxu0 %v389
    %399 = vmatmul.bf16.gmra.mxu0 %v386
    %v400 = vpop.f32.mrf.mxu0
    %v401 = vadd.f32 0.0, %v400
    %v402 = vpop.f32.mrf.mxu0
    %403 = vdwg.mxu0
    %v405 = vsel %vm264, %v316, 0
    %v408 = vsel %vm298, %v317, 0
    %410 = vmatpush.bf16.msra.mxu0 0
    %411 = vmatpush.bf16.msra.mxu0 0
    %412 = vmatpush.bf16.msra.mxu0 0
    %413 = vmatpush.bf16.msra.mxu0 0
    %414 = vmatpush.bf16.msra.mxu0 0
    %415 = vmatpush.bf16.msra.mxu0 0
    %416 = vmatpush.bf16.msra.mxu0 0
    %417 = vmatpush.bf16.msra.mxu0 %v408
    %418 = vmatmul.bf16.gmra.mxu0 %v405
    %v419 = vpop.f32.mrf.mxu0
    %v420 = vadd.f32 %v401, %v419
    %v421 = vpop.f32.mrf.mxu0
    %422 = vdwg.mxu0
    %423 = vrot.lane.b32.xlu0 %v320, 112
    %v424 = vpop.permute.xlu0 %423
    %425 = vrot.lane.b32.xlu0 %v325, 112
    %v426 = vpop.permute.xlu0 %425
    %v428 = vsel %vm264, %v424, 0
    %v431 = vsel %vm264, %v426, 0
    %433 = vmatpush.bf16.xpose.msra.mxu0 0
    %434 = vmatpush.bf16.xpose.msra.mxu0 0
    %435 = vmatpush.bf16.xpose.msra.mxu0 0
    %436 = vmatpush.bf16.xpose.msra.mxu0 0
    %437 = vmatpush.bf16.xpose.msra.mxu0 0
    %438 = vmatpush.bf16.xpose.msra.mxu0 0
    %439 = vmatpush.bf16.xpose.msra.mxu0 0
    %440 = vmatpush.bf16.xpose.msra.mxu0 %v431
    %441 = vmatmul.bf16.gmra.mxu0 %v428
    %v442 = vpop.f32.mrf.mxu0
    %v443 = vadd.f32 0.0, %v442
    %v444 = vpop.f32.mrf.mxu0
    %445 = vdwg.mxu0
    %v446 = vsel %vm264, %v443, -inf
    %447 = vmax.xlane.f32.xlu0 %v446
    %v448 = vpop.xlane.xlu0 %447
    %v449 = vsub.f32 %v443, %v448
    %v450 = vmul.f32 %v449, 1.442695
    %v451 = vpow.pop %v450
    %v452 = vsel %vm264, %v451, 0.0
    %453 = vadd.xlane.f32.xlu0 %v452
    %v454 = vpop.xlane.xlu0 %453
    %v455 = vrcp.pop %v454
    %v456 = vpack.c.bf16 %v451, %v451
    %457 = vrot.lane.b32.xlu0 %v360, 112
    %v458 = vpop.permute.xlu0 %457
    %v460 = vsel %vm264, %v456, 0
    %v463 = vsel %vm298, %v458, 0
    %465 = vmatpush.bf16.msra.mxu0 0
    %466 = vmatpush.bf16.msra.mxu0 0
    %467 = vmatpush.bf16.msra.mxu0 0
    %468 = vmatpush.bf16.msra.mxu0 0
    %469 = vmatpush.bf16.msra.mxu0 0
    %470 = vmatpush.bf16.msra.mxu0 0
    %471 = vmatpush.bf16.msra.mxu0 0
    %472 = vmatpush.bf16.msra.mxu0 %v463
    %473 = vmatmul.bf16.gmra.mxu0 %v460
    %v474 = vpop.f32.mrf.mxu0
    %v475 = vadd.f32 0.0, %v474
    %v476 = vpop.f32.mrf.mxu0
    %477 = vdwg.mxu0
    %v478 = vmul.f32 %v475, %v455
    %v479 = vpack.c.bf16 %v478, %v478
    %v480 = vld [vmem:[#allocation13 + $0x8] sm:$0xf]
    %v482 = vsel %vm264, %v479, 0
    %v485 = vsel %vm298, %v480, 0
    %487 = vmatpush.bf16.msra.mxu0 0
    %488 = vmatpush.bf16.msra.mxu0 0
    %489 = vmatpush.bf16.msra.mxu0 0
    %490 = vmatpush.bf16.msra.mxu0 0
    %491 = vmatpush.bf16.msra.mxu0 0
    %492 = vmatpush.bf16.msra.mxu0 0
    %493 = vmatpush.bf16.msra.mxu0 0
    %494 = vmatpush.bf16.msra.mxu0 %v485
    %495 = vmatmul.bf16.gmra.mxu0 %v482
    %v496 = vpop.f32.mrf.mxu0
    %v497 = vadd.f32 0.0, %v496
    %v498 = vpop.f32.mrf.mxu0
    %499 = vdwg.mxu0
    %v500 = vadd.f32 %v420, %v497
    %501 = vrot.lane.b32.xlu0 %v320, 104
    %v502 = vpop.permute.xlu0 %501
    %503 = vrot.lane.b32.xlu0 %v325, 104
    %v504 = vpop.permute.xlu0 %503
    %v506 = vsel %vm264, %v502, 0
    %v509 = vsel %vm264, %v504, 0
    %511 = vmatpush.bf16.xpose.msra.mxu0 0
    %512 = vmatpush.bf16.xpose.msra.mxu0 0
    %513 = vmatpush.bf16.xpose.msra.mxu0 0
    %514 = vmatpush.bf16.xpose.msra.mxu0 0
    %515 = vmatpush.bf16.xpose.msra.mxu0 0
    %516 = vmatpush.bf16.xpose.msra.mxu0 0
    %517 = vmatpush.bf16.xpose.msra.mxu0 0
    %518 = vmatpush.bf16.xpose.msra.mxu0 %v509
    %519 = vmatmul.bf16.gmra.mxu0 %v506
    %v520 = vpop.f32.mrf.mxu0
    %v521 = vadd.f32 0.0, %v520
    %v522 = vpop.f32.mrf.mxu0
    %523 = vdwg.mxu0
    %v524 = vsel %vm264, %v521, -inf
    %525 = vmax.xlane.f32.xlu0 %v524
    %v526 = vpop.xlane.xlu0 %525
    %v527 = vsub.f32 %v521, %v526
    %v528 = vmul.f32 %v527, 1.442695
    %v529 = vpow.pop %v528
    %v530 = vsel %vm264, %v529, 0.0
    %531 = vadd.xlane.f32.xlu0 %v530
    %v532 = vpop.xlane.xlu0 %531
    %v533 = vrcp.pop %v532
    %v534 = vpack.c.bf16 %v529, %v529
    %535 = vrot.lane.b32.xlu0 %v360, 104
    %v536 = vpop.permute.xlu0 %535
    %v538 = vsel %vm264, %v534, 0
    %v541 = vsel %vm298, %v536, 0
    %543 = vmatpush.bf16.msra.mxu0 0
    %544 = vmatpush.bf16.msra.mxu0 0
    %545 = vmatpush.bf16.msra.mxu0 0
    %546 = vmatpush.bf16.msra.mxu0 0
    %547 = vmatpush.bf16.msra.mxu0 0
    %548 = vmatpush.bf16.msra.mxu0 0
    %549 = vmatpush.bf16.msra.mxu0 0
    %550 = vmatpush.bf16.msra.mxu0 %v541
    %551 = vmatmul.bf16.gmra.mxu0 %v538
    %v552 = vpop.f32.mrf.mxu0
    %v553 = vadd.f32 0.0, %v552
    %v554 = vpop.f32.mrf.mxu0
    %555 = vdwg.mxu0
    %v556 = vmul.f32 %v553, %v533
    %v557 = vpack.c.bf16 %v556, %v556
    %v558 = vld [vmem:[#allocation13 + $0xc] sm:$0xf]
    %v560 = vsel %vm264, %v557, 0
    %v563 = vsel %vm298, %v558, 0
    %565 = vmatpush.bf16.msra.mxu0 0
    %566 = vmatpush.bf16.msra.mxu0 0
    %567 = vmatpush.bf16.msra.mxu0 0
    %568 = vmatpush.bf16.msra.mxu0 0
    %569 = vmatpush.bf16.msra.mxu0 0
    %570 = vmatpush.bf16.msra.mxu0 0
    %571 = vmatpush.bf16.msra.mxu0 0
    %572 = vmatpush.bf16.msra.mxu0 %v563
    %573 = vmatmul.bf16.gmra.mxu0 %v560
    %v574 = vpop.f32.mrf.mxu0
    %v575 = vadd.f32 0.0, %v574
    %v576 = vpop.f32.mrf.mxu0
    %577 = vdwg.mxu0
    %v578 = vadd.f32 %v500, %v575
    %v580 = vperm.slane %v263, 0
    %v582 = vadd.f32 %v578, %v580
    %583 = vst.msk [vmem:[#allocation14] sm:$0xff] %vm167, %v582
    %v585 = vsel %vm264, %v186, 0
    %v588 = vsel %vm264, %v224, 0
    %590 = vmatpush.bf16.xpose.msra.mxu0 0
    %591 = vmatpush.bf16.xpose.msra.mxu0 0
    %592 = vmatpush.bf16.xpose.msra.mxu0 0
    %593 = vmatpush.bf16.xpose.msra.mxu0 0
    %594 = vmatpush.bf16.xpose.msra.mxu0 0
    %595 = vmatpush.bf16.xpose.msra.mxu0 0
    %596 = vmatpush.bf16.xpose.msra.mxu0 0
    %597 = vmatpush.bf16.xpose.msra.mxu0 %v588
    %598 = vmatmul.bf16.gmra.mxu0 %v585
    %v599 = vpop.f32.mrf.mxu0
    %v600 = vadd.f32 0.0, %v599
    %v601 = vpop.f32.mrf.mxu0
    %602 = vdwg.mxu0
    %v603 = vsel %vm264, %v600, -inf
    %604 = vmax.xlane.f32.xlu0 %v603
    %v605 = vpop.xlane.xlu0 %604
    %v606 = vsub.f32 %v600, %v605
    %v607 = vmul.f32 %v606, 1.442695
    %v608 = vpow.pop %v607
    %v609 = vsel %vm264, %v608, 0.0
    %610 = vadd.xlane.f32.xlu0 %v609
    %v611 = vpop.xlane.xlu0 %610
    %v612 = vrcp.pop %v611
    %v613 = vpack.c.bf16 %v608, %v608
    %v615 = vsel %vm264, %v613, 0
    %v618 = vsel %vm298, %v262, 0
    %620 = vmatpush.bf16.msra.mxu0 0
    %621 = vmatpush.bf16.msra.mxu0 0
    %622 = vmatpush.bf16.msra.mxu0 0
    %623 = vmatpush.bf16.msra.mxu0 0
    %624 = vmatpush.bf16.msra.mxu0 0
    %625 = vmatpush.bf16.msra.mxu0 0
    %626 = vmatpush.bf16.msra.mxu0 0
    %627 = vmatpush.bf16.msra.mxu0 %v618
    %628 = vmatmul.bf16.gmra.mxu0 %v615
    %v629 = vpop.f32.mrf.mxu0
    %v630 = vadd.f32 0.0, %v629
    %v631 = vpop.f32.mrf.mxu0
    %632 = vdwg.mxu0
    %v633 = vmul.f32 %v630, %v612
    %v634 = vpack.c.bf16 %v633, %v633
    %v635 = vld [vmem:[#allocation13] sm:$0xf]
    %v637 = vunpack.c.l.b16 %v186
    %v638 = vpack.c.b16 %v637, %v637
    %639 = vrot.lane.b32.xlu0 %v638, 120
    %v640 = vpop.permute.xlu0 %639
    %v642 = vunpack.c.l.b16 %v224
    %v643 = vpack.c.b16 %v642, %v642
    %644 = vrot.lane.b32.xlu0 %v643, 120
    %v645 = vpop.permute.xlu0 %644
    %v647 = vsel %vm264, %v640, 0
    %v650 = vsel %vm264, %v645, 0
    %652 = vmatpush.bf16.xpose.msra.mxu0 0
    %653 = vmatpush.bf16.xpose.msra.mxu0 0
    %654 = vmatpush.bf16.xpose.msra.mxu0 0
    %655 = vmatpush.bf16.xpose.msra.mxu0 0
    %656 = vmatpush.bf16.xpose.msra.mxu0 0
    %657 = vmatpush.bf16.xpose.msra.mxu0 0
    %658 = vmatpush.bf16.xpose.msra.mxu0 0
    %659 = vmatpush.bf16.xpose.msra.mxu0 %v650
    %660 = vmatmul.bf16.gmra.mxu0 %v647
    %v661 = vpop.f32.mrf.mxu0
    %v662 = vadd.f32 0.0, %v661
    %v663 = vpop.f32.mrf.mxu0
    %664 = vdwg.mxu0
    %v665 = vsel %vm264, %v662, -inf
    %666 = vmax.xlane.f32.xlu0 %v665
    %v667 = vpop.xlane.xlu0 %666
    %v668 = vsub.f32 %v662, %v667
    %v669 = vmul.f32 %v668, 1.442695
    %v670 = vpow.pop %v669
    %v671 = vsel %vm264, %v670, 0.0
    %672 = vadd.xlane.f32.xlu0 %v671
    %v673 = vpop.xlane.xlu0 %672
    %v674 = vrcp.pop %v673
    %v675 = vpack.c.bf16 %v670, %v670
    %v677 = vunpack.c.l.b16 %v262
    %v678 = vpack.c.b16 %v677, %v677
    %679 = vrot.lane.b32.xlu0 %v678, 120
    %v680 = vpop.permute.xlu0 %679
    %v682 = vsel %vm264, %v675, 0
    %v685 = vsel %vm298, %v680, 0
    %687 = vmatpush.bf16.msra.mxu0 0
    %688 = vmatpush.bf16.msra.mxu0 0
    %689 = vmatpush.bf16.msra.mxu0 0
    %690 = vmatpush.bf16.msra.mxu0 0
    %691 = vmatpush.bf16.msra.mxu0 0
    %692 = vmatpush.bf16.msra.mxu0 0
    %693 = vmatpush.bf16.msra.mxu0 0
    %694 = vmatpush.bf16.msra.mxu0 %v685
    %695 = vmatmul.bf16.gmra.mxu0 %v682
    %v696 = vpop.f32.mrf.mxu0
    %v697 = vadd.f32 0.0, %v696
    %v698 = vpop.f32.mrf.mxu0
    %699 = vdwg.mxu0
    %v700 = vmul.f32 %v697, %v674
    %v701 = vpack.c.bf16 %v700, %v700
    %v702 = vld [vmem:[#allocation13 + $0x4] sm:$0xf]
    %v704 = vsel %vm264, %v701, 0
    %v707 = vsel %vm298, %v702, 0
    %709 = vmatpush.bf16.msra.mxu0 0
    %710 = vmatpush.bf16.msra.mxu0 0
    %711 = vmatpush.bf16.msra.mxu0 0
    %712 = vmatpush.bf16.msra.mxu0 0
    %713 = vmatpush.bf16.msra.mxu0 0
    %714 = vmatpush.bf16.msra.mxu0 0
    %715 = vmatpush.bf16.msra.mxu0 0
    %716 = vmatpush.bf16.msra.mxu0 %v707
    %717 = vmatmul.bf16.gmra.mxu0 %v704
    %v718 = vpop.f32.mrf.mxu0
    %v719 = vadd.f32 0.0, %v718
    %v720 = vpop.f32.mrf.mxu0
    %721 = vdwg.mxu0
    %v723 = vsel %vm264, %v634, 0
    %v726 = vsel %vm298, %v635, 0
    %728 = vmatpush.bf16.msra.mxu0 0
    %729 = vmatpush.bf16.msra.mxu0 0
    %730 = vmatpush.bf16.msra.mxu0 0
    %731 = vmatpush.bf16.msra.mxu0 0
    %732 = vmatpush.bf16.msra.mxu0 0
    %733 = vmatpush.bf16.msra.mxu0 0
    %734 = vmatpush.bf16.msra.mxu0 0
    %735 = vmatpush.bf16.msra.mxu0 %v726
    %736 = vmatmul.bf16.gmra.mxu0 %v723
    %v737 = vpop.f32.mrf.mxu0
    %v738 = vadd.f32 %v719, %v737
    %v739 = vpop.f32.mrf.mxu0
    %740 = vdwg.mxu0
    %741 = vrot.lane.b32.xlu0 %v638, 112
    %v742 = vpop.permute.xlu0 %741
    %743 = vrot.lane.b32.xlu0 %v643, 112
    %v744 = vpop.permute.xlu0 %743
    %v746 = vsel %vm264, %v742, 0
    %v749 = vsel %vm264, %v744, 0
    %751 = vmatpush.bf16.xpose.msra.mxu0 0
    %752 = vmatpush.bf16.xpose.msra.mxu0 0
    %753 = vmatpush.bf16.xpose.msra.mxu0 0
    %754 = vmatpush.bf16.xpose.msra.mxu0 0
    %755 = vmatpush.bf16.xpose.msra.mxu0 0
    %756 = vmatpush.bf16.xpose.msra.mxu0 0
    %757 = vmatpush.bf16.xpose.msra.mxu0 0
    %758 = vmatpush.bf16.xpose.msra.mxu0 %v749
    %759 = vmatmul.bf16.gmra.mxu0 %v746
    %v760 = vpop.f32.mrf.mxu0
    %v761 = vadd.f32 0.0, %v760
    %v762 = vpop.f32.mrf.mxu0
    %763 = vdwg.mxu0
    %v764 = vsel %vm264, %v761, -inf
    %765 = vmax.xlane.f32.xlu0 %v764
    %v766 = vpop.xlane.xlu0 %765
    %v767 = vsub.f32 %v761, %v766
    %v768 = vmul.f32 %v767, 1.442695
    %v769 = vpow.pop %v768
    %v770 = vsel %vm264, %v769, 0.0
    %771 = vadd.xlane.f32.xlu0 %v770
    %v772 = vpop.xlane.xlu0 %771
    %v773 = vrcp.pop %v772
    %v774 = vpack.c.bf16 %v769, %v769
    %775 = vrot.lane.b32.xlu0 %v678, 112
    %v776 = vpop.permute.xlu0 %775
    %v778 = vsel %vm264, %v774, 0
    %v781 = vsel %vm298, %v776, 0
    %783 = vmatpush.bf16.msra.mxu0 0
    %784 = vmatpush.bf16.msra.mxu0 0
    %785 = vmatpush.bf16.msra.mxu0 0
    %786 = vmatpush.bf16.msra.mxu0 0
    %787 = vmatpush.bf16.msra.mxu0 0
    %788 = vmatpush.bf16.msra.mxu0 0
    %789 = vmatpush.bf16.msra.mxu0 0
    %790 = vmatpush.bf16.msra.mxu0 %v781
    %791 = vmatmul.bf16.gmra.mxu0 %v778
    %v792 = vpop.f32.mrf.mxu0
    %v793 = vadd.f32 0.0, %v792
    %v794 = vpop.f32.mrf.mxu0
    %795 = vdwg.mxu0
    %v796 = vmul.f32 %v793, %v773
    %v797 = vpack.c.bf16 %v796, %v796
    %v798 = vld [vmem:[#allocation13 + $0x8] sm:$0xf]
    %v800 = vsel %vm264, %v797, 0
    %v803 = vsel %vm298, %v798, 0
    %805 = vmatpush.bf16.msra.mxu0 0
    %806 = vmatpush.bf16.msra.mxu0 0
    %807 = vmatpush.bf16.msra.mxu0 0
    %808 = vmatpush.bf16.msra.mxu0 0
    %809 = vmatpush.bf16.msra.mxu0 0
    %810 = vmatpush.bf16.msra.mxu0 0
    %811 = vmatpush.bf16.msra.mxu0 0
    %812 = vmatpush.bf16.msra.mxu0 %v803
    %813 = vmatmul.bf16.gmra.mxu0 %v800
    %v814 = vpop.f32.mrf.mxu0
    %v815 = vadd.f32 0.0, %v814
    %v816 = vpop.f32.mrf.mxu0
    %817 = vdwg.mxu0
    %v818 = vadd.f32 %v738, %v815
    %819 = vrot.lane.b32.xlu0 %v638, 104
    %v820 = vpop.permute.xlu0 %819
    %821 = vrot.lane.b32.xlu0 %v643, 104
    %v822 = vpop.permute.xlu0 %821
    %v824 = vsel %vm264, %v820, 0
    %v827 = vsel %vm264, %v822, 0
    %829 = vmatpush.bf16.xpose.msra.mxu0 0
    %830 = vmatpush.bf16.xpose.msra.mxu0 0
    %831 = vmatpush.bf16.xpose.msra.mxu0 0
    %832 = vmatpush.bf16.xpose.msra.mxu0 0
    %833 = vmatpush.bf16.xpose.msra.mxu0 0
    %834 = vmatpush.bf16.xpose.msra.mxu0 0
    %835 = vmatpush.bf16.xpose.msra.mxu0 0
    %836 = vmatpush.bf16.xpose.msra.mxu0 %v827
    %837 = vmatmul.bf16.gmra.mxu0 %v824
    %v838 = vpop.f32.mrf.mxu0
    %v839 = vadd.f32 0.0, %v838
    %v840 = vpop.f32.mrf.mxu0
    %841 = vdwg.mxu0
    %v842 = vsel %vm264, %v839, -inf
    %843 = vmax.xlane.f32.xlu0 %v842
    %v844 = vpop.xlane.xlu0 %843
    %v845 = vsub.f32 %v839, %v844
    %v846 = vmul.f32 %v845, 1.442695
    %v847 = vpow.pop %v846
    %v848 = vsel %vm264, %v847, 0.0
    %849 = vadd.xlane.f32.xlu0 %v848
    %v850 = vpop.xlane.xlu0 %849
    %v851 = vrcp.pop %v850
    %v852 = vpack.c.bf16 %v847, %v847
    %853 = vrot.lane.b32.xlu0 %v678, 104
    %v854 = vpop.permute.xlu0 %853
    %v856 = vsel %vm264, %v852, 0
    %v859 = vsel %vm298, %v854, 0
    %861 = vmatpush.bf16.msra.mxu0 0
    %862 = vmatpush.bf16.msra.mxu0 0
    %863 = vmatpush.bf16.msra.mxu0 0
    %864 = vmatpush.bf16.msra.mxu0 0
    %865 = vmatpush.bf16.msra.mxu0 0
    %866 = vmatpush.bf16.msra.mxu0 0
    %867 = vmatpush.bf16.msra.mxu0 0
    %868 = vmatpush.bf16.msra.mxu0 %v859
    %869 = vmatmul.bf16.gmra.mxu0 %v856
    %v870 = vpop.f32.mrf.mxu0
    %v871 = vadd.f32 0.0, %v870
    %v872 = vpop.f32.mrf.mxu0
    %873 = vdwg.mxu0
    %v874 = vmul.f32 %v871, %v851
    %v875 = vpack.c.bf16 %v874, %v874
    %v876 = vld [vmem:[#allocation13 + $0xc] sm:$0xf]
    %v878 = vsel %vm264, %v875, 0
    %v881 = vsel %vm298, %v876, 0
    %883 = vmatpush.bf16.msra.mxu0 0
    %884 = vmatpush.bf16.msra.mxu0 0
    %885 = vmatpush.bf16.msra.mxu0 0
    %886 = vmatpush.bf16.msra.mxu0 0
    %887 = vmatpush.bf16.msra.mxu0 0
    %888 = vmatpush.bf16.msra.mxu0 0
    %889 = vmatpush.bf16.msra.mxu0 0
    %890 = vmatpush.bf16.msra.mxu0 %v881
    %891 = vmatmul.bf16.gmra.mxu0 %v878
    %v892 = vpop.f32.mrf.mxu0
    %v893 = vadd.f32 0.0, %v892
    %v894 = vpop.f32.mrf.mxu0
    %895 = vdwg.mxu0
    %v896 = vadd.f32 %v818, %v893
    %v897 = vadd.f32 %v896, %v580
    %898 = vst.msk [vmem:[#allocation14 + $0x8] sm:$0xff] %vm167, %v897
    // Predicated region
    $region62: #{tpu_custom_call.1} parent=1 // pred_check
      _
    $region63: #{tpu_custom_call.1} parent=1 // pred_check_branch
      %900 = sbr.rel (0) target = $region65
    $region64: #{tpu_custom_call.1} parent=1 // pred_region
      %s901 = sadd.s32 0, 0
      %s902 = smul.u32 2, %s901
      %904 = vsyncadd [#allocation4], 0
      %s905 = smul.addr %s902, 8
      %s906 = scalar_lea.hbm %s8, %s905
      %s907 = sshll.u32 [#allocation14], 4
      %s908 = int_to_ptr.vmem [resolvable:$true] %s907
      %s909 = sshll.u32 %s906, 4
      %s910 = int_to_ptr.hbm [resolvable:$true] %s909
      %915 = dma.vmem_to_hbm [thread:$0]  %s908, 256, %s910, [#allocation4], 128, 128, 8
    $region65: #{tpu_custom_call.1} parent=1 // pred_fallthru
      _
    // Predicated region
    $region66: #{tpu_custom_call.1} parent=1 // pred_check
      _
    $region67: #{tpu_custom_call.1} parent=1 // pred_check_branch
      %917 = sbr.rel (0) target = $region69
    $region68: #{tpu_custom_call.1} parent=1 // pred_region
      %919 = dma.done [#allocation4], 256
    $region69: #{tpu_custom_call.1} parent=1 // pred_fallthru
      _
    %920 = vsyncpa [#allocation3], 1
    %921 = vsyncpa [#allocation6], 1
    %922 = vsyncpa [#allocation9], 1
    %923 = vsyncpa [#allocation12], 1
    %924 = vsyncpa [#allocation4], 1

// kernel: tpu_custom_call.1
$region0: #{tpu_custom_call.1}
  #allocation0 [shape = 'u32[]', space=smem, size = 0x4, offset = 0x4, fixed_abs, tag = 'smem constant byte address 0x4 - core index']
  #allocation1 [shape = 'u32[72,128]{1,0:T(1,128)}', space=vmem, size = 0x9000, scoped, tag = 'internal scratch']
  %s0 = inlined_call_operand.hbm [shape: f32[16,32], index: 0, kind: input, shape index: {}]
  %s1 = inlined_call_operand.hbm [shape: f32[16,32], index: 1, kind: input, shape index: {}]
  %s2 = inlined_call_operand.hbm [shape: f32[16,32], index: 2, kind: input, shape index: {}]
  %s3 = inlined_call_operand.hbm [shape: bf16[32,32], index: 3, kind: input, shape index: {}]
  %s4 = inlined_call_operand.hbm [shape: bf16[32,32], index: 4, kind: input, shape index: {}]
  %s5 = inlined_call_operand.hbm [shape: bf16[32,32], index: 5, kind: input, shape index: {}]
  %s6 = inlined_call_operand.hbm [shape: bf16[32,32], index: 6, kind: input, shape index: {}]
  %s7 = inlined_call_operand.vmem [shape: f32[1,32], index: 7, kind: input, shape index: {}]
  %s8 = inlined_call_operand.hbm [shape: f32[16,32], index: 8, kind: output, shape index: {}]
  %s9 = sld [smem:[#allocation0]]
  $region70: #{tpu_custom_call.1} parent=0
    _
  %s11 = ssub.s32 1, %s9
  %s12 = scalar_select 0, %s11, %s9
  $region1: #{tpu_custom_call.1} parent=0
    #allocation2 [shape = 'u8[8192]{0}', space=vmem, size = 0x2000, scoped, tag = 'input window, operand 0, single buffered']
    #allocation3 [shape = 's32[1]{0}', space=sflag, size = 0x4, scoped, tag = 'scoped memory for tpu_custom_call.1']
    #allocation4 [shape = 's32[1]{0}', space=sflag, size = 0x4, scoped, tag = 'scoped memory for tpu_custom_call.1']
    #allocation5 [shape = 'u8[8192]{0}', space=vmem, size = 0x2000, scoped, tag = 'input window, operand 1, single buffered']
    #allocation6 [shape = 's32[1]{0}', space=sflag, size = 0x4, scoped, tag = 'scoped memory for tpu_custom_call.1']
    #allocation7 [shape = 'u8[8192]{0}', space=vmem, size = 0x2000, scoped, tag = 'input window, operand 2, single buffered']
    #allocation8 [shape = 'u8[8192]{0}', space=vmem, size = 0x2000, scoped, tag = 'input window, operand 3, single buffered']
    #allocation9 [shape = 's32[1]{0}', space=sflag, size = 0x4, scoped, tag = 'scoped memory for tpu_custom_call.1']
    #allocation10 [shape = 'u8[8192]{0}', space=vmem, size = 0x2000, scoped, tag = 'input window, operand 4, single buffered']
    #allocation11 [shape = 'u8[8192]{0}', space=vmem, size = 0x2000, scoped, tag = 'input window, operand 5, single buffered']
    #allocation12 [shape = 's32[1]{0}', space=sflag, size = 0x4, scoped, tag = 'scoped memory for tpu_custom_call.1']
    #allocation13 [shape = 'u8[8192]{0}', space=vmem, size = 0x2000, scoped, tag = 'input window, operand 6, single buffered']
    #allocation14 [shape = 'u8[8192]{0}', space=vmem, size = 0x2000, scoped, tag = 'output window, operand 0, single buffered']
    %13 = vsyncpa [#allocation3], 0
    %14 = vsyncpa [#allocation6], 0
    %15 = vsyncpa [#allocation9], 0
    %16 = vsyncpa [#allocation12], 0
    %17 = vsyncpa [#allocation4], 0
    // Predicated region
    $region2: #{tpu_custom_call.1} parent=1 // pred_check
      _
    $region3: #{tpu_custom_call.1} parent=1 // pred_check_branch
      %19 = sbr.rel (0) target = $region5
    $region4: #{tpu_custom_call.1} parent=1 // pred_region
      %s20 = sadd.s32 0, 0
      %s21 = smul.u32 2, %s20
      %23 = vsyncadd [#allocation3], 0
      %s24 = smul.addr %s21, 8
      %s25 = scalar_lea.hbm %s0, %s24
      %s26 = sshll.u32 %s25, 4
      %s27 = int_to_ptr.hbm [resolvable:$true] %s26
      %s28 = sshll.u32 [#allocation2], 4
      %s29 = int_to_ptr.vmem [resolvable:$true] %s28
      %34 = dma.hbm_to_vmem [thread:$0]  %s27, 256, %s29, [#allocation3], 128, 128, 8
    $region5: #{tpu_custom_call.1} parent=1 // pred_fallthru
      _
    // Predicated region
    $region6: #{tpu_custom_call.1} parent=1 // pred_check
      _
    $region7: #{tpu_custom_call.1} parent=1 // pred_check_branch
      %36 = sbr.rel (0) target = $region9
    $region8: #{tpu_custom_call.1} parent=1 // pred_region
      %38 = vsyncadd [#allocation6], 0
      %s39 = sshll.u32 %s1, 4
      %s40 = int_to_ptr.hbm [resolvable:$true] %s39
      %s41 = sshll.u32 [#allocation5], 4
      %s42 = int_to_ptr.vmem [resolvable:$true] %s41
      %47 = dma.hbm_to_vmem [thread:$0]  %s40, 256, %s42, [#allocation6], 128, 128, 8
    $region9: #{tpu_custom_call.1} parent=1 // pred_fallthru
      _
    // Predicated region
    $region10: #{tpu_custom_call.1} parent=1 // pred_check
      _
    $region11: #{tpu_custom_call.1} parent=1 // pred_check_branch
      %49 = sbr.rel (0) target = $region13
    $region12: #{tpu_custom_call.1} parent=1 // pred_region
      %51 = vsyncadd [#allocation6], 0
      %s52 = sshll.u32 %s2, 4
      %s53 = int_to_ptr.hbm [resolvable:$true] %s52
      %s54 = sshll.u32 [#allocation7], 4
      %s55 = int_to_ptr.vmem [resolvable:$true] %s54
      %60 = dma.hbm_to_vmem [thread:$0]  %s53, 256, %s55, [#allocation6], 128, 128, 8
    $region13: #{tpu_custom_call.1} parent=1 // pred_fallthru
      _
    // Predicated region
    $region14: #{tpu_custom_call.1} parent=1 // pred_check
      _
    $region15: #{tpu_custom_call.1} parent=1 // pred_check_branch
      %62 = sbr.rel (0) target = $region17
    $region16: #{tpu_custom_call.1} parent=1 // pred_region
      %64 = vsyncadd [#allocation9], 0
      %s65 = sshll.u32 %s3, 4
      %s66 = int_to_ptr.hbm [resolvable:$true] %s65
      %s67 = sshll.u32 [#allocation8], 4
      %s68 = int_to_ptr.vmem [resolvable:$true] %s67
      %73 = dma.hbm_to_vmem [thread:$0]  %s66, 256, %s68, [#allocation9], 64, 64, 4
    $region17: #{tpu_custom_call.1} parent=1 // pred_fallthru
      _
    // Predicated region
    $region18: #{tpu_custom_call.1} parent=1 // pred_check
      _
    $region19: #{tpu_custom_call.1} parent=1 // pred_check_branch
      %75 = sbr.rel (0) target = $region21
    $region20: #{tpu_custom_call.1} parent=1 // pred_region
      %77 = vsyncadd [#allocation9], 0
      %s78 = sshll.u32 %s4, 4
      %s79 = int_to_ptr.hbm [resolvable:$true] %s78
      %s80 = sshll.u32 [#allocation10], 4
      %s81 = int_to_ptr.vmem [resolvable:$true] %s80
      %86 = dma.hbm_to_vmem [thread:$0]  %s79, 256, %s81, [#allocation9], 64, 64, 4
    $region21: #{tpu_custom_call.1} parent=1 // pred_fallthru
      _
    // Predicated region
    $region22: #{tpu_custom_call.1} parent=1 // pred_check
      _
    $region23: #{tpu_custom_call.1} parent=1 // pred_check_branch
      %88 = sbr.rel (0) target = $region25
    $region24: #{tpu_custom_call.1} parent=1 // pred_region
      %90 = vsyncadd [#allocation12], 0
      %s91 = sshll.u32 %s5, 4
      %s92 = int_to_ptr.hbm [resolvable:$true] %s91
      %s93 = sshll.u32 [#allocation11], 4
      %s94 = int_to_ptr.vmem [resolvable:$true] %s93
      %99 = dma.hbm_to_vmem [thread:$0]  %s92, 256, %s94, [#allocation12], 64, 64, 4
    $region25: #{tpu_custom_call.1} parent=1 // pred_fallthru
      _
    // Predicated region
    $region26: #{tpu_custom_call.1} parent=1 // pred_check
      _
    $region27: #{tpu_custom_call.1} parent=1 // pred_check_branch
      %101 = sbr.rel (0) target = $region29
    $region28: #{tpu_custom_call.1} parent=1 // pred_region
      %103 = vsyncadd [#allocation12], 0
      %s104 = sshll.u32 %s6, 4
      %s105 = int_to_ptr.hbm [resolvable:$true] %s104
      %s106 = sshll.u32 [#allocation13], 4
      %s107 = int_to_ptr.vmem [resolvable:$true] %s106
      %112 = dma.hbm_to_vmem [thread:$0]  %s105, 256, %s107, [#allocation12], 64, 64, 4
    $region29: #{tpu_custom_call.1} parent=1 // pred_fallthru
      _
    // Predicated region
    $region30: #{tpu_custom_call.1} parent=1 // pred_check
      _
    $region31: #{tpu_custom_call.1} parent=1 // pred_check_branch
      %114 = sbr.rel (0) target = $region33
    $region32: #{tpu_custom_call.1} parent=1 // pred_region
      _
    $region33: #{tpu_custom_call.1} parent=1 // pred_fallthru
      _
    // Predicated region
    $region34: #{tpu_custom_call.1} parent=1 // pred_check
      _
    $region35: #{tpu_custom_call.1} parent=1 // pred_check_branch
      %116 = sbr.rel (0) target = $region37
    $region36: #{tpu_custom_call.1} parent=1 // pred_region
      %118 = dma.done [#allocation3], 256
    $region37: #{tpu_custom_call.1} parent=1 // pred_fallthru
      _
    // Predicated region
    $region38: #{tpu_custom_call.1} parent=1 // pred_check
      _
    $region39: #{tpu_custom_call.1} parent=1 // pred_check_branch
      %120 = sbr.rel (0) target = $region41
    $region40: #{tpu_custom_call.1} parent=1 // pred_region
      %122 = dma.done [#allocation6], 256
    $region41: #{tpu_custom_call.1} parent=1 // pred_fallthru
      _
    // Predicated region
    $region42: #{tpu_custom_call.1} parent=1 // pred_check
      _
    $region43: #{tpu_custom_call.1} parent=1 // pred_check_branch
      %124 = sbr.rel (0) target = $region45
    $region44: #{tpu_custom_call.1} parent=1 // pred_region
      %126 = dma.done [#allocation6], 256
    $region45: #{tpu_custom_call.1} parent=1 // pred_fallthru
      _
    // Predicated region
    $region46: #{tpu_custom_call.1} parent=1 // pred_check
      _
    $region47: #{tpu_custom_call.1} parent=1 // pred_check_branch
      %128 = sbr.rel (0) target = $region49
    $region48: #{tpu_custom_call.1} parent=1 // pred_region
      %130 = dma.done [#allocation9], 256
    $region49: #{tpu_custom_call.1} parent=1 // pred_fallthru
      _
    // Predicated region
    $region50: #{tpu_custom_call.1} parent=1 // pred_check
      _
    $region51: #{tpu_custom_call.1} parent=1 // pred_check_branch
      %132 = sbr.rel (0) target = $region53
    $region52: #{tpu_custom_call.1} parent=1 // pred_region
      %134 = dma.done [#allocation9], 256
    $region53: #{tpu_custom_call.1} parent=1 // pred_fallthru
      _
    // Predicated region
    $region54: #{tpu_custom_call.1} parent=1 // pred_check
      _
    $region55: #{tpu_custom_call.1} parent=1 // pred_check_branch
      %136 = sbr.rel (0) target = $region57
    $region56: #{tpu_custom_call.1} parent=1 // pred_region
      %138 = dma.done [#allocation12], 256
    $region57: #{tpu_custom_call.1} parent=1 // pred_fallthru
      _
    // Predicated region
    $region58: #{tpu_custom_call.1} parent=1 // pred_check
      _
    $region59: #{tpu_custom_call.1} parent=1 // pred_check_branch
      %140 = sbr.rel (0) target = $region61
    $region60: #{tpu_custom_call.1} parent=1 // pred_region
      %142 = dma.done [#allocation12], 256
    $region61: #{tpu_custom_call.1} parent=1 // pred_fallthru
      _
    %s143 = sadd.s32 0, 0
    %s144 = smul.u32 2, %s143
    %s145 = sadd.s32 0, 0
    %s146 = smul.u32 2, %s145
    %v148 = vld [vmem:[#allocation2] sm:$0xff]
    %v149 = vld [vmem:[#allocation2 + $0x8] sm:$0xff]
    %v150 = vpack.c.bf16 %v149, %v148
    %v151 = vld [vmem:[#allocation8] sm:$0xf]
    %v152 = vld [vmem:[#allocation8 + $0x4] sm:$0xf]
    %v153 = vld [vmem:[#allocation8 + $0x8] sm:$0xf]
    %v154 = vld [vmem:[#allocation8 + $0xc] sm:$0xf]
    %v159 = vunpack.c.l.b16 %v151
    %v160 = vunpack.c.l.b16 %v152
    %v161 = vunpack.c.l.b16 %v153
    %v162 = vunpack.c.l.b16 %v154
    %v163 = vpack.c.b16 %v160, %v159
    %v164 = vpack.c.b16 %v162, %v161
    %vm167 = vcmask 261120
    %v169 = vsel %vm167, %v150, 0
    %171 = vmatpush.bf16.msra.mxu0 0
    %172 = vmatpush.bf16.msra.mxu0 0
    %173 = vmatpush.bf16.msra.mxu0 0
    %174 = vmatpush.bf16.msra.mxu0 0
    %175 = vmatpush.bf16.msra.mxu0 0
    %176 = vmatpush.bf16.msra.mxu0 0
    %177 = vmatpush.bf16.msra.mxu0 %v164
    %178 = vmatpush.bf16.msra.mxu0 %v163
    %179 = vmatmul.bf16.gmra.mxu0 %v169
    %v180 = vpop.f32.mrf.mxu0
    %v181 = vadd.f32 0.0, %v180
    %v182 = vpop.f32.mrf.mxu0
    %v183 = vadd.f32 0.0, %v182
    %184 = vdwg.mxu0
    %v185 = vpack.c.bf16 %v181, %v181
    %v186 = vpack.c.bf16 %v183, %v183
    %v187 = vld [vmem:[#allocation5] sm:$0xff]
    %v188 = vld [vmem:[#allocation5 + $0x8] sm:$0xff]
    %v189 = vpack.c.bf16 %v188, %v187
    %v190 = vld [vmem:[#allocation10] sm:$0xf]
    %v191 = vld [vmem:[#allocation10 + $0x4] sm:$0xf]
    %v192 = vld [vmem:[#allocation10 + $0x8] sm:$0xf]
    %v193 = vld [vmem:[#allocation10 + $0xc] sm:$0xf]
    %v198 = vunpack.c.l.b16 %v190
    %v199 = vunpack.c.l.b16 %v191
    %v200 = vunpack.c.l.b16 %v192
    %v201 = vunpack.c.l.b16 %v193
    %v202 = vpack.c.b16 %v199, %v198
    %v203 = vpack.c.b16 %v201, %v200
    %v207 = vsel %vm167, %v189, 0
    %209 = vmatpush.bf16.msra.mxu0 0
    %210 = vmatpush.bf16.msra.mxu0 0
    %211 = vmatpush.bf16.msra.mxu0 0
    %212 = vmatpush.bf16.msra.mxu0 0
    %213 = vmatpush.bf16.msra.mxu0 0
    %214 = vmatpush.bf16.msra.mxu0 0
    %215 = vmatpush.bf16.msra.mxu0 %v203
    %216 = vmatpush.bf16.msra.mxu0 %v202
    %217 = vmatmul.bf16.gmra.mxu0 %v207
    %v218 = vpop.f32.mrf.mxu0
    %v219 = vadd.f32 0.0, %v218
    %v220 = vpop.f32.mrf.mxu0
    %v221 = vadd.f32 0.0, %v220
    %222 = vdwg.mxu0
    %v223 = vpack.c.bf16 %v219, %v219
    %v224 = vpack.c.bf16 %v221, %v221
    %v225 = vld [vmem:[#allocation7] sm:$0xff]
    %v226 = vld [vmem:[#allocation7 + $0x8] sm:$0xff]
    %v227 = vpack.c.bf16 %v226, %v225
    %v228 = vld [vmem:[#allocation11] sm:$0xf]
    %v229 = vld [vmem:[#allocation11 + $0x4] sm:$0xf]
    %v230 = vld [vmem:[#allocation11 + $0x8] sm:$0xf]
    %v231 = vld [vmem:[#allocation11 + $0xc] sm:$0xf]
    %v236 = vunpack.c.l.b16 %v228
    %v237 = vunpack.c.l.b16 %v229
    %v238 = vunpack.c.l.b16 %v230
    %v239 = vunpack.c.l.b16 %v231
    %v240 = vpack.c.b16 %v237, %v236
    %v241 = vpack.c.b16 %v239, %v238
    %v245 = vsel %vm167, %v227, 0
    %247 = vmatpush.bf16.msra.mxu0 0
    %248 = vmatpush.bf16.msra.mxu0 0
    %249 = vmatpush.bf16.msra.mxu0 0
    %250 = vmatpush.bf16.msra.mxu0 0
    %251 = vmatpush.bf16.msra.mxu0 0
    %252 = vmatpush.bf16.msra.mxu0 0
    %253 = vmatpush.bf16.msra.mxu0 %v241
    %254 = vmatpush.bf16.msra.mxu0 %v240
    %255 = vmatmul.bf16.gmra.mxu0 %v245
    %v256 = vpop.f32.mrf.mxu0
    %v257 = vadd.f32 0.0, %v256
    %v258 = vpop.f32.mrf.mxu0
    %v259 = vadd.f32 0.0, %v258
    %260 = vdwg.mxu0
    %v261 = vpack.c.bf16 %v257, %v257
    %v262 = vpack.c.bf16 %v259, %v259
    %v263 = vld [vmem:[%s7] sm:$0x1]
    %vm264 = vcmask 64512
    %v266 = vsel %vm264, %v185, 0
    %v269 = vsel %vm264, %v223, 0
    %271 = vmatpush.bf16.xpose.msra.mxu0 0
    %272 = vmatpush.bf16.xpose.msra.mxu0 0
    %273 = vmatpush.bf16.xpose.msra.mxu0 0
    %274 = vmatpush.bf16.xpose.msra.mxu0 0
    %275 = vmatpush.bf16.xpose.msra.mxu0 0
    %276 = vmatpush.bf16.xpose.msra.mxu0 0
    %277 = vmatpush.bf16.xpose.msra.mxu0 0
    %278 = vmatpush.bf16.xpose.msra.mxu0 %v269
    %279 = vmatmul.bf16.gmra.mxu0 %v266
    %v280 = vpop.f32.mrf.mxu0
    %v281 = vadd.f32 0.0, %v280
    %v282 = vpop.f32.mrf.mxu0
    %283 = vdwg.mxu0
    %v284 = vsel %vm264, %v281, -inf
    %285 = vmax.xlane.f32.xlu0 %v284
    %v286 = vpop.xlane.xlu0 %285
    %v287 = vsub.f32 %v281, %v286
    %v288 = vmul.f32 %v287, 1.442695
    %v289 = vpow.pop %v288
    %v290 = vsel %vm264, %v289, 0.0
    %291 = vadd.xlane.f32.xlu0 %v290
    %v292 = vpop.xlane.xlu0 %291
    %v293 = vrcp.pop %v292
    %v294 = vpack.c.bf16 %v289, %v289
    %v296 = vsel %vm264, %v294, 0
    %vm298 = vcmask 1043456
    %v300 = vsel %vm298, %v261, 0
    %302 = vmatpush.bf16.msra.mxu0 0
    %303 = vmatpush.bf16.msra.mxu0 0
    %304 = vmatpush.bf16.msra.mxu0 0
    %305 = vmatpush.bf16.msra.mxu0 0
    %306 = vmatpush.bf16.msra.mxu0 0
    %307 = vmatpush.bf16.msra.mxu0 0
    %308 = vmatpush.bf16.msra.mxu0 0
    %309 = vmatpush.bf16.msra.mxu0 %v300
    %310 = vmatmul.bf16.gmra.mxu0 %v296
    %v311 = vpop.f32.mrf.mxu0
    %v312 = vadd.f32 0.0, %v311
    %v313 = vpop.f32.mrf.mxu0
    %314 = vdwg.mxu0
    %v315 = vmul.f32 %v312, %v293
    %v316 = vpack.c.bf16 %v315, %v315
    %v317 = vld [vmem:[#allocation13] sm:$0xf]
    %v319 = vunpack.c.l.b16 %v185
    %v320 = vpack.c.b16 %v319, %v319
    %321 = vrot.lane.b32.xlu0 %v320, 120
    %v322 = vpop.permute.xlu0 %321
    %v324 = vunpack.c.l.b16 %v223
    %v325 = vpack.c.b16 %v324, %v324
    %326 = vrot.lane.b32.xlu0 %v325, 120
    %v327 = vpop.permute.xlu0 %326
    %v329 = vsel %vm264, %v322, 0
    %v332 = vsel %vm264, %v327, 0
    %334 = vmatpush.bf16.xpose.msra.mxu0 0
    %335 = vmatpush.bf16.xpose.msra.mxu0 0
    %336 = vmatpush.bf16.xpose.msra.mxu0 0
    %337 = vmatpush.bf16.xpose.msra.mxu0 0
    %338 = vmatpush.bf16.xpose.msra.mxu0 0
    %339 = vmatpush.bf16.xpose.msra.mxu0 0
    %340 = vmatpush.bf16.xpose.msra.mxu0 0
    %341 = vmatpush.bf16.xpose.msra.mxu0 %v332
    %342 = vmatmul.bf16.gmra.mxu0 %v329
    %v343 = vpop.f32.mrf.mxu0
    %v344 = vadd.f32 0.0, %v343
    %v345 = vpop.f32.mrf.mxu0
    %346 = vdwg.mxu0
    %v347 = vsel %vm264, %v344, -inf
    %348 = vmax.xlane.f32.xlu0 %v347
    %v349 = vpop.xlane.xlu0 %348
    %v350 = vsub.f32 %v344, %v349
    %v351 = vmul.f32 %v350, 1.442695
    %v352 = vpow.pop %v351
    %v353 = vsel %vm264, %v352, 0.0
    %354 = vadd.xlane.f32.xlu0 %v353
    %v355 = vpop.xlane.xlu0 %354
    %v356 = vrcp.pop %v355
    %v357 = vpack.c.bf16 %v352, %v352
    %v359 = vunpack.c.l.b16 %v261
    %v360 = vpack.c.b16 %v359, %v359
    %361 = vrot.lane.b32.xlu0 %v360, 120
    %v362 = vpop.permute.xlu0 %361
    %v364 = vsel %vm264, %v357, 0
    %v367 = vsel %vm298, %v362, 0
    %369 = vmatpush.bf16.msra.mxu0 0
    %370 = vmatpush.bf16.msra.mxu0 0
    %371 = vmatpush.bf16.msra.mxu0 0
    %372 = vmatpush.bf16.msra.mxu0 0
    %373 = vmatpush.bf16.msra.mxu0 0
    %374 = vmatpush.bf16.msra.mxu0 0
    %375 = vmatpush.bf16.msra.mxu0 0
    %376 = vmatpush.bf16.msra.mxu0 %v367
    %377 = vmatmul.bf16.gmra.mxu0 %v364
    %v378 = vpop.f32.mrf.mxu0
    %v379 = vadd.f32 0.0, %v378
    %v380 = vpop.f32.mrf.mxu0
    %381 = vdwg.mxu0
    %v382 = vmul.f32 %v379, %v356
    %v383 = vpack.c.bf16 %v382, %v382
    %v384 = vld [vmem:[#allocation13 + $0x4] sm:$0xf]
    %v386 = vsel %vm264, %v383, 0
    %v389 = vsel %vm298, %v384, 0
    %391 = vmatpush.bf16.msra.mxu0 0
    %392 = vmatpush.bf16.msra.mxu0 0
    %393 = vmatpush.bf16.msra.mxu0 0
    %394 = vmatpush.bf16.msra.mxu0 0
    %395 = vmatpush.bf16.msra.mxu0 0
    %396 = vmatpush.bf16.msra.mxu0 0
    %397 = vmatpush.bf16.msra.mxu0 0
    %398 = vmatpush.bf16.msra.mxu0 %v389
    %399 = vmatmul.bf16.gmra.mxu0 %v386
    %v400 = vpop.f32.mrf.mxu0
    %v401 = vadd.f32 0.0, %v400
    %v402 = vpop.f32.mrf.mxu0
    %403 = vdwg.mxu0
    %v405 = vsel %vm264, %v316, 0
    %v408 = vsel %vm298, %v317, 0
    %410 = vmatpush.bf16.msra.mxu0 0
    %411 = vmatpush.bf16.msra.mxu0 0
    %412 = vmatpush.bf16.msra.mxu0 0
    %413 = vmatpush.bf16.msra.mxu0 0
    %414 = vmatpush.bf16.msra.mxu0 0
    %415 = vmatpush.bf16.msra.mxu0 0
    %416 = vmatpush.bf16.msra.mxu0 0
    %417 = vmatpush.bf16.msra.mxu0 %v408
    %418 = vmatmul.bf16.gmra.mxu0 %v405
    %v419 = vpop.f32.mrf.mxu0
    %v420 = vadd.f32 %v401, %v419
    %v421 = vpop.f32.mrf.mxu0
    %422 = vdwg.mxu0
    %423 = vrot.lane.b32.xlu0 %v320, 112
    %v424 = vpop.permute.xlu0 %423
    %425 = vrot.lane.b32.xlu0 %v325, 112
    %v426 = vpop.permute.xlu0 %425
    %v428 = vsel %vm264, %v424, 0
    %v431 = vsel %vm264, %v426, 0
    %433 = vmatpush.bf16.xpose.msra.mxu0 0
    %434 = vmatpush.bf16.xpose.msra.mxu0 0
    %435 = vmatpush.bf16.xpose.msra.mxu0 0
    %436 = vmatpush.bf16.xpose.msra.mxu0 0
    %437 = vmatpush.bf16.xpose.msra.mxu0 0
    %438 = vmatpush.bf16.xpose.msra.mxu0 0
    %439 = vmatpush.bf16.xpose.msra.mxu0 0
    %440 = vmatpush.bf16.xpose.msra.mxu0 %v431
    %441 = vmatmul.bf16.gmra.mxu0 %v428
    %v442 = vpop.f32.mrf.mxu0
    %v443 = vadd.f32 0.0, %v442
    %v444 = vpop.f32.mrf.mxu0
    %445 = vdwg.mxu0
    %v446 = vsel %vm264, %v443, -inf
    %447 = vmax.xlane.f32.xlu0 %v446
    %v448 = vpop.xlane.xlu0 %447
    %v449 = vsub.f32 %v443, %v448
    %v450 = vmul.f32 %v449, 1.442695
    %v451 = vpow.pop %v450
    %v452 = vsel %vm264, %v451, 0.0
    %453 = vadd.xlane.f32.xlu0 %v452
    %v454 = vpop.xlane.xlu0 %453
    %v455 = vrcp.pop %v454
    %v456 = vpack.c.bf16 %v451, %v451
    %457 = vrot.lane.b32.xlu0 %v360, 112
    %v458 = vpop.permute.xlu0 %457
    %v460 = vsel %vm264, %v456, 0
    %v463 = vsel %vm298, %v458, 0
    %465 = vmatpush.bf16.msra.mxu0 0
    %466 = vmatpush.bf16.msra.mxu0 0
    %467 = vmatpush.bf16.msra.mxu0 0
    %468 = vmatpush.bf16.msra.mxu0 0
    %469 = vmatpush.bf16.msra.mxu0 0
    %470 = vmatpush.bf16.msra.mxu0 0
    %471 = vmatpush.bf16.msra.mxu0 0
    %472 = vmatpush.bf16.msra.mxu0 %v463
    %473 = vmatmul.bf16.gmra.mxu0 %v460
    %v474 = vpop.f32.mrf.mxu0
    %v475 = vadd.f32 0.0, %v474
    %v476 = vpop.f32.mrf.mxu0
    %477 = vdwg.mxu0
    %v478 = vmul.f32 %v475, %v455
    %v479 = vpack.c.bf16 %v478, %v478
    %v480 = vld [vmem:[#allocation13 + $0x8] sm:$0xf]
    %v482 = vsel %vm264, %v479, 0
    %v485 = vsel %vm298, %v480, 0
    %487 = vmatpush.bf16.msra.mxu0 0
    %488 = vmatpush.bf16.msra.mxu0 0
    %489 = vmatpush.bf16.msra.mxu0 0
    %490 = vmatpush.bf16.msra.mxu0 0
    %491 = vmatpush.bf16.msra.mxu0 0
    %492 = vmatpush.bf16.msra.mxu0 0
    %493 = vmatpush.bf16.msra.mxu0 0
    %494 = vmatpush.bf16.msra.mxu0 %v485
    %495 = vmatmul.bf16.gmra.mxu0 %v482
    %v496 = vpop.f32.mrf.mxu0
    %v497 = vadd.f32 0.0, %v496
    %v498 = vpop.f32.mrf.mxu0
    %499 = vdwg.mxu0
    %v500 = vadd.f32 %v420, %v497
    %501 = vrot.lane.b32.xlu0 %v320, 104
    %v502 = vpop.permute.xlu0 %501
    %503 = vrot.lane.b32.xlu0 %v325, 104
    %v504 = vpop.permute.xlu0 %503
    %v506 = vsel %vm264, %v502, 0
    %v509 = vsel %vm264, %v504, 0
    %511 = vmatpush.bf16.xpose.msra.mxu0 0
    %512 = vmatpush.bf16.xpose.msra.mxu0 0
    %513 = vmatpush.bf16.xpose.msra.mxu0 0
    %514 = vmatpush.bf16.xpose.msra.mxu0 0
    %515 = vmatpush.bf16.xpose.msra.mxu0 0
    %516 = vmatpush.bf16.xpose.msra.mxu0 0
    %517 = vmatpush.bf16.xpose.msra.mxu0 0
    %518 = vmatpush.bf16.xpose.msra.mxu0 %v509
    %519 = vmatmul.bf16.gmra.mxu0 %v506
    %v520 = vpop.f32.mrf.mxu0
    %v521 = vadd.f32 0.0, %v520
    %v522 = vpop.f32.mrf.mxu0
    %523 = vdwg.mxu0
    %v524 = vsel %vm264, %v521, -inf
    %525 = vmax.xlane.f32.xlu0 %v524
    %v526 = vpop.xlane.xlu0 %525
    %v527 = vsub.f32 %v521, %v526
    %v528 = vmul.f32 %v527, 1.442695
    %v529 = vpow.pop %v528
    %v530 = vsel %vm264, %v529, 0.0
    %531 = vadd.xlane.f32.xlu0 %v530
    %v532 = vpop.xlane.xlu0 %531
    %v533 = vrcp.pop %v532
    %v534 = vpack.c.bf16 %v529, %v529
    %535 = vrot.lane.b32.xlu0 %v360, 104
    %v536 = vpop.permute.xlu0 %535
    %v538 = vsel %vm264, %v534, 0
    %v541 = vsel %vm298, %v536, 0
    %543 = vmatpush.bf16.msra.mxu0 0
    %544 = vmatpush.bf16.msra.mxu0 0
    %545 = vmatpush.bf16.msra.mxu0 0
    %546 = vmatpush.bf16.msra.mxu0 0
    %547 = vmatpush.bf16.msra.mxu0 0
    %548 = vmatpush.bf16.msra.mxu0 0
    %549 = vmatpush.bf16.msra.mxu0 0
    %550 = vmatpush.bf16.msra.mxu0 %v541
    %551 = vmatmul.bf16.gmra.mxu0 %v538
    %v552 = vpop.f32.mrf.mxu0
    %v553 = vadd.f32 0.0, %v552
    %v554 = vpop.f32.mrf.mxu0
    %555 = vdwg.mxu0
    %v556 = vmul.f32 %v553, %v533
    %v557 = vpack.c.bf16 %v556, %v556
    %v558 = vld [vmem:[#allocation13 + $0xc] sm:$0xf]
    %v560 = vsel %vm264, %v557, 0
    %v563 = vsel %vm298, %v558, 0
    %565 = vmatpush.bf16.msra.mxu0 0
    %566 = vmatpush.bf16.msra.mxu0 0
    %567 = vmatpush.bf16.msra.mxu0 0
    %568 = vmatpush.bf16.msra.mxu0 0
    %569 = vmatpush.bf16.msra.mxu0 0
    %570 = vmatpush.bf16.msra.mxu0 0
    %571 = vmatpush.bf16.msra.mxu0 0
    %572 = vmatpush.bf16.msra.mxu0 %v563
    %573 = vmatmul.bf16.gmra.mxu0 %v560
    %v574 = vpop.f32.mrf.mxu0
    %v575 = vadd.f32 0.0, %v574
    %v576 = vpop.f32.mrf.mxu0
    %577 = vdwg.mxu0
    %v578 = vadd.f32 %v500, %v575
    %v580 = vperm.slane %v263, 0
    %v582 = vadd.f32 %v578, %v580
    %583 = vst.msk [vmem:[#allocation14] sm:$0xff] %vm167, %v582
    %v585 = vsel %vm264, %v186, 0
    %v588 = vsel %vm264, %v224, 0
    %590 = vmatpush.bf16.xpose.msra.mxu0 0
    %591 = vmatpush.bf16.xpose.msra.mxu0 0
    %592 = vmatpush.bf16.xpose.msra.mxu0 0
    %593 = vmatpush.bf16.xpose.msra.mxu0 0
    %594 = vmatpush.bf16.xpose.msra.mxu0 0
    %595 = vmatpush.bf16.xpose.msra.mxu0 0
    %596 = vmatpush.bf16.xpose.msra.mxu0 0
    %597 = vmatpush.bf16.xpose.msra.mxu0 %v588
    %598 = vmatmul.bf16.gmra.mxu0 %v585
    %v599 = vpop.f32.mrf.mxu0
    %v600 = vadd.f32 0.0, %v599
    %v601 = vpop.f32.mrf.mxu0
    %602 = vdwg.mxu0
    %v603 = vsel %vm264, %v600, -inf
    %604 = vmax.xlane.f32.xlu0 %v603
    %v605 = vpop.xlane.xlu0 %604
    %v606 = vsub.f32 %v600, %v605
    %v607 = vmul.f32 %v606, 1.442695
    %v608 = vpow.pop %v607
    %v609 = vsel %vm264, %v608, 0.0
    %610 = vadd.xlane.f32.xlu0 %v609
    %v611 = vpop.xlane.xlu0 %610
    %v612 = vrcp.pop %v611
    %v613 = vpack.c.bf16 %v608, %v608
    %v615 = vsel %vm264, %v613, 0
    %v618 = vsel %vm298, %v262, 0
    %620 = vmatpush.bf16.msra.mxu0 0
    %621 = vmatpush.bf16.msra.mxu0 0
    %622 = vmatpush.bf16.msra.mxu0 0
    %623 = vmatpush.bf16.msra.mxu0 0
    %624 = vmatpush.bf16.msra.mxu0 0
    %625 = vmatpush.bf16.msra.mxu0 0
    %626 = vmatpush.bf16.msra.mxu0 0
    %627 = vmatpush.bf16.msra.mxu0 %v618
    %628 = vmatmul.bf16.gmra.mxu0 %v615
    %v629 = vpop.f32.mrf.mxu0
    %v630 = vadd.f32 0.0, %v629
    %v631 = vpop.f32.mrf.mxu0
    %632 = vdwg.mxu0
    %v633 = vmul.f32 %v630, %v612
    %v634 = vpack.c.bf16 %v633, %v633
    %v635 = vld [vmem:[#allocation13] sm:$0xf]
    %v637 = vunpack.c.l.b16 %v186
    %v638 = vpack.c.b16 %v637, %v637
    %639 = vrot.lane.b32.xlu0 %v638, 120
    %v640 = vpop.permute.xlu0 %639
    %v642 = vunpack.c.l.b16 %v224
    %v643 = vpack.c.b16 %v642, %v642
    %644 = vrot.lane.b32.xlu0 %v643, 120
    %v645 = vpop.permute.xlu0 %644
    %v647 = vsel %vm264, %v640, 0
    %v650 = vsel %vm264, %v645, 0
    %652 = vmatpush.bf16.xpose.msra.mxu0 0
    %653 = vmatpush.bf16.xpose.msra.mxu0 0
    %654 = vmatpush.bf16.xpose.msra.mxu0 0
    %655 = vmatpush.bf16.xpose.msra.mxu0 0
    %656 = vmatpush.bf16.xpose.msra.mxu0 0
    %657 = vmatpush.bf16.xpose.msra.mxu0 0
    %658 = vmatpush.bf16.xpose.msra.mxu0 0
    %659 = vmatpush.bf16.xpose.msra.mxu0 %v650
    %660 = vmatmul.bf16.gmra.mxu0 %v647
    %v661 = vpop.f32.mrf.mxu0
    %v662 = vadd.f32 0.0, %v661
    %v663 = vpop.f32.mrf.mxu0
    %664 = vdwg.mxu0
    %v665 = vsel %vm264, %v662, -inf
    %666 = vmax.xlane.f32.xlu0 %v665
    %v667 = vpop.xlane.xlu0 %666
    %v668 = vsub.f32 %v662, %v667
    %v669 = vmul.f32 %v668, 1.442695
    %v670 = vpow.pop %v669
    %v671 = vsel %vm264, %v670, 0.0
    %672 = vadd.xlane.f32.xlu0 %v671
    %v673 = vpop.xlane.xlu0 %672
    %v674 = vrcp.pop %v673
    %v675 = vpack.c.bf16 %v670, %v670
    %v677 = vunpack.c.l.b16 %v262
    %v678 = vpack.c.b16 %v677, %v677
    %679 = vrot.lane.b32.xlu0 %v678, 120
    %v680 = vpop.permute.xlu0 %679
    %v682 = vsel %vm264, %v675, 0
    %v685 = vsel %vm298, %v680, 0
    %687 = vmatpush.bf16.msra.mxu0 0
    %688 = vmatpush.bf16.msra.mxu0 0
    %689 = vmatpush.bf16.msra.mxu0 0
    %690 = vmatpush.bf16.msra.mxu0 0
    %691 = vmatpush.bf16.msra.mxu0 0
    %692 = vmatpush.bf16.msra.mxu0 0
    %693 = vmatpush.bf16.msra.mxu0 0
    %694 = vmatpush.bf16.msra.mxu0 %v685
    %695 = vmatmul.bf16.gmra.mxu0 %v682
    %v696 = vpop.f32.mrf.mxu0
    %v697 = vadd.f32 0.0, %v696
    %v698 = vpop.f32.mrf.mxu0
    %699 = vdwg.mxu0
    %v700 = vmul.f32 %v697, %v674
    %v701 = vpack.c.bf16 %v700, %v700
    %v702 = vld [vmem:[#allocation13 + $0x4] sm:$0xf]
    %v704 = vsel %vm264, %v701, 0
    %v707 = vsel %vm298, %v702, 0
    %709 = vmatpush.bf16.msra.mxu0 0
    %710 = vmatpush.bf16.msra.mxu0 0
    %711 = vmatpush.bf16.msra.mxu0 0
    %712 = vmatpush.bf16.msra.mxu0 0
    %713 = vmatpush.bf16.msra.mxu0 0
    %714 = vmatpush.bf16.msra.mxu0 0
    %715 = vmatpush.bf16.msra.mxu0 0
    %716 = vmatpush.bf16.msra.mxu0 %v707
    %717 = vmatmul.bf16.gmra.mxu0 %v704
    %v718 = vpop.f32.mrf.mxu0
    %v719 = vadd.f32 0.0, %v718
    %v720 = vpop.f32.mrf.mxu0
    %721 = vdwg.mxu0
    %v723 = vsel %vm264, %v634, 0
    %v726 = vsel %vm298, %v635, 0
    %728 = vmatpush.bf16.msra.mxu0 0
    %729 = vmatpush.bf16.msra.mxu0 0
    %730 = vmatpush.bf16.msra.mxu0 0
    %731 = vmatpush.bf16.msra.mxu0 0
    %732 = vmatpush.bf16.msra.mxu0 0
    %733 = vmatpush.bf16.msra.mxu0 0
    %734 = vmatpush.bf16.msra.mxu0 0
    %735 = vmatpush.bf16.msra.mxu0 %v726
    %736 = vmatmul.bf16.gmra.mxu0 %v723
    %v737 = vpop.f32.mrf.mxu0
    %v738 = vadd.f32 %v719, %v737
    %v739 = vpop.f32.mrf.mxu0
    %740 = vdwg.mxu0
    %741 = vrot.lane.b32.xlu0 %v638, 112
    %v742 = vpop.permute.xlu0 %741
    %743 = vrot.lane.b32.xlu0 %v643, 112
    %v744 = vpop.permute.xlu0 %743
    %v746 = vsel %vm264, %v742, 0
    %v749 = vsel %vm264, %v744, 0
    %751 = vmatpush.bf16.xpose.msra.mxu0 0
    %752 = vmatpush.bf16.xpose.msra.mxu0 0
    %753 = vmatpush.bf16.xpose.msra.mxu0 0
    %754 = vmatpush.bf16.xpose.msra.mxu0 0
    %755 = vmatpush.bf16.xpose.msra.mxu0 0
    %756 = vmatpush.bf16.xpose.msra.mxu0 0
    %757 = vmatpush.bf16.xpose.msra.mxu0 0
    %758 = vmatpush.bf16.xpose.msra.mxu0 %v749
    %759 = vmatmul.bf16.gmra.mxu0 %v746
    %v760 = vpop.f32.mrf.mxu0
    %v761 = vadd.f32 0.0, %v760
    %v762 = vpop.f32.mrf.mxu0
    %763 = vdwg.mxu0
    %v764 = vsel %vm264, %v761, -inf
    %765 = vmax.xlane.f32.xlu0 %v764
    %v766 = vpop.xlane.xlu0 %765
    %v767 = vsub.f32 %v761, %v766
    %v768 = vmul.f32 %v767, 1.442695
    %v769 = vpow.pop %v768
    %v770 = vsel %vm264, %v769, 0.0
    %771 = vadd.xlane.f32.xlu0 %v770
    %v772 = vpop.xlane.xlu0 %771
    %v773 = vrcp.pop %v772
    %v774 = vpack.c.bf16 %v769, %v769
    %775 = vrot.lane.b32.xlu0 %v678, 112
    %v776 = vpop.permute.xlu0 %775
    %v778 = vsel %vm264, %v774, 0
    %v781 = vsel %vm298, %v776, 0
    %783 = vmatpush.bf16.msra.mxu0 0
    %784 = vmatpush.bf16.msra.mxu0 0
    %785 = vmatpush.bf16.msra.mxu0 0
    %786 = vmatpush.bf16.msra.mxu0 0
    %787 = vmatpush.bf16.msra.mxu0 0
    %788 = vmatpush.bf16.msra.mxu0 0
    %789 = vmatpush.bf16.msra.mxu0 0
    %790 = vmatpush.bf16.msra.mxu0 %v781
    %791 = vmatmul.bf16.gmra.mxu0 %v778
    %v792 = vpop.f32.mrf.mxu0
    %v793 = vadd.f32 0.0, %v792
    %v794 = vpop.f32.mrf.mxu0
    %795 = vdwg.mxu0
    %v796 = vmul.f32 %v793, %v773
    %v797 = vpack.c.bf16 %v796, %v796
    %v798 = vld [vmem:[#allocation13 + $0x8] sm:$0xf]
    %v800 = vsel %vm264, %v797, 0
    %v803 = vsel %vm298, %v798, 0
    %805 = vmatpush.bf16.msra.mxu0 0
    %806 = vmatpush.bf16.msra.mxu0 0
    %807 = vmatpush.bf16.msra.mxu0 0
    %808 = vmatpush.bf16.msra.mxu0 0
    %809 = vmatpush.bf16.msra.mxu0 0
    %810 = vmatpush.bf16.msra.mxu0 0
    %811 = vmatpush.bf16.msra.mxu0 0
    %812 = vmatpush.bf16.msra.mxu0 %v803
    %813 = vmatmul.bf16.gmra.mxu0 %v800
    %v814 = vpop.f32.mrf.mxu0
    %v815 = vadd.f32 0.0, %v814
    %v816 = vpop.f32.mrf.mxu0
    %817 = vdwg.mxu0
    %v818 = vadd.f32 %v738, %v815
    %819 = vrot.lane.b32.xlu0 %v638, 104
    %v820 = vpop.permute.xlu0 %819
    %821 = vrot.lane.b32.xlu0 %v643, 104
    %v822 = vpop.permute.xlu0 %821
    %v824 = vsel %vm264, %v820, 0
    %v827 = vsel %vm264, %v822, 0
    %829 = vmatpush.bf16.xpose.msra.mxu0 0
    %830 = vmatpush.bf16.xpose.msra.mxu0 0
    %831 = vmatpush.bf16.xpose.msra.mxu0 0
    %832 = vmatpush.bf16.xpose.msra.mxu0 0
    %833 = vmatpush.bf16.xpose.msra.mxu0 0
    %834 = vmatpush.bf16.xpose.msra.mxu0 0
    %835 = vmatpush.bf16.xpose.msra.mxu0 0
    %836 = vmatpush.bf16.xpose.msra.mxu0 %v827
    %837 = vmatmul.bf16.gmra.mxu0 %v824
    %v838 = vpop.f32.mrf.mxu0
    %v839 = vadd.f32 0.0, %v838
    %v840 = vpop.f32.mrf.mxu0
    %841 = vdwg.mxu0
    %v842 = vsel %vm264, %v839, -inf
    %843 = vmax.xlane.f32.xlu0 %v842
    %v844 = vpop.xlane.xlu0 %843
    %v845 = vsub.f32 %v839, %v844
    %v846 = vmul.f32 %v845, 1.442695
    %v847 = vpow.pop %v846
    %v848 = vsel %vm264, %v847, 0.0
    %849 = vadd.xlane.f32.xlu0 %v848
    %v850 = vpop.xlane.xlu0 %849
    %v851 = vrcp.pop %v850
    %v852 = vpack.c.bf16 %v847, %v847
    %853 = vrot.lane.b32.xlu0 %v678, 104
    %v854 = vpop.permute.xlu0 %853
    %v856 = vsel %vm264, %v852, 0
    %v859 = vsel %vm298, %v854, 0
    %861 = vmatpush.bf16.msra.mxu0 0
    %862 = vmatpush.bf16.msra.mxu0 0
    %863 = vmatpush.bf16.msra.mxu0 0
    %864 = vmatpush.bf16.msra.mxu0 0
    %865 = vmatpush.bf16.msra.mxu0 0
    %866 = vmatpush.bf16.msra.mxu0 0
    %867 = vmatpush.bf16.msra.mxu0 0
    %868 = vmatpush.bf16.msra.mxu0 %v859
    %869 = vmatmul.bf16.gmra.mxu0 %v856
    %v870 = vpop.f32.mrf.mxu0
    %v871 = vadd.f32 0.0, %v870
    %v872 = vpop.f32.mrf.mxu0
    %873 = vdwg.mxu0
    %v874 = vmul.f32 %v871, %v851
    %v875 = vpack.c.bf16 %v874, %v874
    %v876 = vld [vmem:[#allocation13 + $0xc] sm:$0xf]
    %v878 = vsel %vm264, %v875, 0
    %v881 = vsel %vm298, %v876, 0
    %883 = vmatpush.bf16.msra.mxu0 0
    %884 = vmatpush.bf16.msra.mxu0 0
    %885 = vmatpush.bf16.msra.mxu0 0
    %886 = vmatpush.bf16.msra.mxu0 0
    %887 = vmatpush.bf16.msra.mxu0 0
    %888 = vmatpush.bf16.msra.mxu0 0
    %889 = vmatpush.bf16.msra.mxu0 0
    %890 = vmatpush.bf16.msra.mxu0 %v881
    %891 = vmatmul.bf16.gmra.mxu0 %v878
    %v892 = vpop.f32.mrf.mxu0
    %v893 = vadd.f32 0.0, %v892
    %v894 = vpop.f32.mrf.mxu0
    %895 = vdwg.mxu0
    %v896 = vadd.f32 %v818, %v893
    %v897 = vadd.f32 %v896, %v580
    %898 = vst.msk [vmem:[#allocation14 + $0x8] sm:$0xff] %vm167, %v897
    // Predicated region
    $region62: #{tpu_custom_call.1} parent=1 // pred_check
      _
    $region63: #{tpu_custom_call.1} parent=1 // pred_check_branch
      %900 = sbr.rel (0) target = $region65
    $region64: #{tpu_custom_call.1} parent=1 // pred_region
      %s901 = sadd.s32 0, 0
      %s902 = smul.u32 2, %s901
      %904 = vsyncadd [#allocation4], 0
      %s905 = smul.addr %s902, 8
      %s906 = scalar_lea.hbm %s8, %s905
      %s907 = sshll.u32 [#allocation14], 4
      %s908 = int_to_ptr.vmem [resolvable:$true] %s907
      %s909 = sshll.u32 %s906, 4
      %s910 = int_to_ptr.hbm [resolvable:$true] %s909
      %915 = dma.vmem_to_hbm [thread:$0]  %s908, 256, %s910, [#allocation4], 128, 128, 8
    $region65: #{tpu_custom_call.1} parent=1 // pred_fallthru
      _
    // Predicated region
    $region66: #{tpu_custom_call.1} parent=1 // pred_check
      _
    $region67: #{tpu_custom_call.1} parent=1 // pred_check_branch
      %917 = sbr.rel (0) target = $region69
    $region68: #{tpu_custom_call.1} parent=1 // pred_region
      %919 = dma.done [#allocation4], 256
    $region69: #{tpu_custom_call.1} parent=1 // pred_fallthru
      _
    %920 = vsyncpa [#allocation3], 1
    %921 = vsyncpa [#allocation6], 1
    %922 = vsyncpa [#allocation9], 1
    %923 = vsyncpa [#allocation12], 1
    %924 = vsyncpa [#allocation4], 1

</llo_original>
